<compile_context>
chip_gen: v5e
topology: v5e:2x2
jax: 0.10.0
libtpu: 0.0.40
codegen_flags: <defaults>
</compile_context>

<pallas_src>
import numpy as np
import jax
import jax.numpy as jnp
from jax.experimental import pallas as pl
from jax.experimental.pallas import tpu as pltpu

EPS = 1e-5
KSIZE = 3
PAD = 1
NTAPS = KSIZE * KSIZE
RGB = 3


# ------------------------------ Pallas kernel -------------------------------

def _encoder_fused_kernel(x_ref, s12_ref, s3_ref, w_ref, p_ref, o_ref, scr_ref):
    """Whole Encoder forward (step=0): fromrgb + 4x (conv3x3 -> CELU -> BN).

    Each conv is computed as
        scratch[t*m_in:(t+1)*m_in, :] = (A @ W_cat)[:, t*nc:(t+1)*nc]
        out = bias + S_cat @ scratch
    where S_cat (m_out, 9*m_in) is a precomputed 0/1 tap-selection matrix
    encoding im2col + zero padding + stride, and W_cat is the lane-dense
    (nc, 9*nc) tap-major weight.
    """
    f32 = jnp.float32
    nc = o_ref.shape[1]
    m1 = x_ref.shape[0]          # N*4*4 rows (layer-1/2 input, layer-1 output)
    m2 = o_ref.shape[0]          # N*2*2 rows (layer-2/3/4 output)

    p = p_ref[...]               # (16, nc) packed params
    w = w_ref[...]               # (4*nc, 9*nc) packed conv weights (tap-major)

    def conv_celu_bn(a, s_cat, layer, m_in, m_out):
        w_l = w[layer * nc:(layer + 1) * nc, :]                  # (nc, 9*nc)
        aw = jnp.dot(a, w_l, preferred_element_type=f32)         # (m_in, 9*nc)
        for t in range(NTAPS):                                   # independent
            scr_ref[t * m_in:(t + 1) * m_in, :] = aw[:, t * nc:(t + 1) * nc]
        y = jnp.dot(s_cat, scr_ref[0:NTAPS * m_in, :],
                    preferred_element_type=f32)                  # (m_out, nc)
        r = 4 + 3 * layer
        y = y + p[r:r + 1, :]                                    # conv bias
        # CELU(alpha=1): exp sits on the EUP slot.
        # TODO(synk): jnp.expm1 would be marginally more precise for tiny |y|;
        # kept exp(y)-1 for guaranteed Mosaic lowering (diff < 1e-7 here).
        y = jnp.where(y > 0.0, y, jnp.exp(y) - 1.0)
        # BatchNorm2d (training mode): two-pass biased batch statistics.
        inv_m = 1.0 / m_out
        mean = jnp.sum(y, axis=0, keepdims=True) * inv_m
        d = y - mean
        var = jnp.sum(d * d, axis=0, keepdims=True) * inv_m
        scale = jax.lax.rsqrt(var + EPS) * p[r + 1:r + 2, :]     # * gamma
        return d * scale + p[r + 2:r + 3, :]                     # + beta

    # fromrgb: 1x1 conv == plain matmul + bias.
    a = jnp.dot(x_ref[...], p[0:RGB, :], preferred_element_type=f32)
    a = a + p[RGB:RGB + 1, :]
    # EncoderBlock b6: conv strides (1, 2, 1, 1); layers 3/4 reuse s3.
    a = conv_celu_bn(a, s12_ref[0:m1, :], 0, m1, m1)
    a = conv_celu_bn(a, s12_ref[m1:m1 + m2, :], 1, m1, m2)
    a = conv_celu_bn(a, s3_ref[...], 2, m2, m2)
    a = conv_celu_bn(a, s3_ref[...], 3, m2, m2)
    o_ref[...] = a


def _full_spec(shape):
    return pl.BlockSpec(shape, lambda i: (0,) * len(shape))


# ------------------------------- forward pass -------------------------------

@jax.jit
def encoder_forward(x_nchw, sel12, sel3, wslab, pslab):
    """Encoder.forward with default state (step=0, alpha=1)."""
    n, cin, h, w = x_nchw.shape
    assert (h, w) == (4, 4), "step=0 Encoder needs a 4x4 input (output is 2x2)"
    assert cin == RGB
    # TODO(synk): fold this NCHW->rows transpose and the output transpose into
    # the kernel's precomputed layouts (tiny XLA ops bracketing the call).
    x2d = jnp.transpose(x_nchw, (0, 2, 3, 1)).astype(jnp.float32)
    x2d = x2d.reshape(n * h * w, cin)

    nc = pslab.shape[1]
    m1 = n * h * w                       # N*16 rows
    m2 = sel3.shape[0]                   # N*2*2 output rows

    args = (x2d, sel12, sel3, wslab, pslab)

    # Advisory scheduler hints.
    flops = 2 * m1 * cin * nc
    transcendentals = 0
    for m_in, m_out in ((m1, m1), (m1, m2), (m2, m2), (m2, m2)):
        flops += 2 * m_in * nc * NTAPS * nc          # activation x weight
        flops += 2 * m_out * NTAPS * m_in * nc       # selection matmul
        transcendentals += m_out * nc                # CELU exp (upper bound)
    bytes_accessed = 4 * (sum(int(a.size) for a in args) + m2 * nc)

    out2d = pl.pallas_call(
        _encoder_fused_kernel,
        out_shape=jax.ShapeDtypeStruct((m2, nc), jnp.float32),
        grid=(1,),
        in_specs=[_full_spec(a.shape) for a in args],
        out_specs=_full_spec((m2, nc)),
        scratch_shapes=[pltpu.VMEM((NTAPS * m1, nc), jnp.float32)],
        compiler_params=pltpu.CompilerParams(
            dimension_semantics=("arbitrary",),
            # Padded operands + scratch total well under 1 MiB at this size;
            # 16 MiB stays inside every generation's scoped default / v7x
            # physical VMEM while leaving headroom to scale the batch.
            vmem_limit_bytes=16 * 1024 * 1024),
        cost_estimate=pl.CostEstimate(flops=flops,
                                      transcendentals=transcendentals,
                                      bytes_accessed=bytes_accessed),
    )(*args)

    out = out2d.reshape(n, 2, 2, nc)
    return jnp.transpose(out, (0, 3, 1, 2))          # back to NCHW


# --------------------------- operand preparation ----------------------------

def _selection_cat(n, h, w, stride):
    """Lane-dense 0/1 matrix (m_out, 9*m_in): im2col + zero padding + stride."""
    ho = (h + 2 * PAD - KSIZE) // stride + 1
    wo = (w + 2 * PAD - KSIZE) // stride + 1
    m_out, m_in = n * ho * wo, n * h * w
    s = np.zeros((m_out, NTAPS * m_in), np.float32)
    for ki in range(KSIZE):
        for kj in range(KSIZE):
            t = ki * KSIZE + kj
            for b in range(n):
                for i in range(ho):
                    for j in range(wo):
                        hi = i * stride + ki - PAD
                        wi = j * stride + kj - PAD
                        if 0 <= hi < h and 0 <= wi < w:
                            p = (b * ho + i) * wo + j
                            r = (b * h + hi) * w + wi
                            s[p, t * m_in + r] = 1.0
    return s, (ho, wo)


def _conv_weight_cat(w_oihw):
    """(Cout, Cin, 3, 3) torch layout -> lane-dense (Cin, 9*Cout), tap-major."""
    cout, cin, kh, kw = w_oihw.shape
    wt = jnp.transpose(w_oihw, (2, 3, 1, 0)).reshape(kh * kw, cin, cout)
    return jnp.transpose(wt, (1, 0, 2)).reshape(cin, kh * kw * cout)


def prepare_operands(fromrgb_params, block_params, n, h, w):
    """Pack weights/params into 2 slabs + 2 selection slabs (few DMAs)."""
    w_rgb, b_rgb = fromrgb_params
    nc = w_rgb.shape[0]
    s1, (h1, w1) = _selection_cat(n, h, w, 1)        # conv1, stride 1
    s2, (h2, w2) = _selection_cat(n, h1, w1, 2)      # conv2, stride 2
    s3, _ = _selection_cat(n, h2, w2, 1)             # conv3/conv4, stride 1
    sel12 = jnp.asarray(np.concatenate([s1, s2], axis=0))   # shared lane width
    sel3 = jnp.asarray(s3)

    wslab = jnp.concatenate([_conv_weight_cat(bp[0]) for bp in block_params],
                            axis=0)                  # (4*nc, 9*nc)
    prows = [jnp.transpose(w_rgb, (2, 3, 1, 0)).reshape(RGB, nc),  # fromrgb W
             b_rgb.reshape(1, nc)]                                 # fromrgb b
    for _, bc, gamma, beta in block_params:
        prows.append(jnp.stack([bc, gamma, beta], axis=0))         # (3, nc)
    pslab = jnp.concatenate(prows, axis=0)           # (16, nc)
    return sel12, sel3, wslab, pslab


# ---------------------------- parameter init ---------------------------------

def _conv_init(key, cout, cin, k):
    """Deterministic init matching PyTorch Conv2d default bounds."""
    kw_, kb = jax.random.split(key)
    bound = 1.0 / float(np.sqrt(cin * k * k))
    w = jax.random.uniform(kw_, (cout, cin, k, k), jnp.float32, -bound, bound)
    b = jax.random.uniform(kb, (cout,), jnp.float32, -bound, bound)
    return w, b


def make_params(key, nc):
    keys = jax.random.split(key, 5)
    fromrgb = _conv_init(keys[0], nc, RGB, 1)
    block = []
    for i in range(4):            # b6's c1..c4 + BatchNorm defaults
        w, b = _conv_init(keys[1 + i], nc, nc, 3)
        block.append((w, b, jnp.ones((nc,), jnp.float32),
                      jnp.zeros((nc,), jnp.float32)))
    return fromrgb, tuple(block)


# ------------------------------ pure-JAX reference ---------------------------

def _reference_forward(x_nchw, fromrgb_params, block_params):
    """XLA-conv reference of the same forward (validation only)."""
    dn = ("NCHW", "OIHW", "NCHW")
    hp = jax.lax.Precision.HIGHEST
    w_rgb, b_rgb = fromrgb_params
    x = jax.lax.conv_general_dilated(x_nchw.astype(jnp.float32), w_rgb,
                                     (1, 1), "VALID", dimension_numbers=dn,
                                     precision=hp)
    x = x + b_rgb[None, :, None, None]
    for (wc, bc, gamma, beta), s in zip(block_params, (1, 2, 1, 1)):
        x = jax.lax.conv_general_dilated(x, wc, (s, s), ((1, 1), (1, 1)),
                                         dimension_numbers=dn, precision=hp)
        x = x + bc[None, :, None, None]
        x = jnp.where(x > 0.0, x, jnp.expm1(x))
        mean = jnp.mean(x, axis=(0, 2, 3), keepdims=True)
        var = jnp.mean((x - mean) ** 2, axis=(0, 2, 3), keepdims=True)
        x = (x - mean) / jnp.sqrt(var + EPS)
        x = x * gamma[None, :, None, None] + beta[None, :, None, None]
    return x


# --------------------------------- main --------------------------------------

if __name__ == "__main__":
    nc = 8
    batch = 2
    # Encoder.forward asserts a 2x2 output; with step=0 the single
    # EncoderBlock halves the spatial size once, so the input must be 4x4.
    key = jax.random.PRNGKey(0)
    k_x, k_p = jax.random.split(key)
    x = jax.random.normal(k_x, (batch, RGB, 4, 4), jnp.float32)  # NCHW

    fromrgb_params, block_params = make_params(k_p, nc)
    sel12, sel3, wslab, pslab = prepare_operands(fromrgb_params, block_params,
                                                 batch, 4, 4)

    out = jax.block_until_ready(
        encoder_forward(x, sel12, sel3, wslab, pslab))

    assert out.shape == (batch, nc, 2, 2), out.shape
    assert bool(jnp.all(jnp.isfinite(out)))
    ref = _reference_forward(x, fromrgb_params, block_params)
    assert bool(jnp.allclose(out, ref, rtol=5e-2, atol=5e-2)), (
        float(jnp.max(jnp.abs(out - ref))))
    print("KERNEL_OK")
</pallas_src>

<mosaic_0001>
module attributes {stable_mosaic.version = 11 : i64} {
  func.func @_encoder_fused_kernel(%arg0: i32, %arg1: memref<32x3xf32, #tpu.memory_space<vmem>>, %arg2: memref<40x288xf32, #tpu.memory_space<vmem>>, %arg3: memref<8x72xf32, #tpu.memory_space<vmem>>, %arg4: memref<32x72xf32, #tpu.memory_space<vmem>>, %arg5: memref<16x8xf32, #tpu.memory_space<vmem>>, %arg6: memref<8x8xf32, #tpu.memory_space<vmem>>, %arg7: memref<288x8xf32, #tpu.memory_space<vmem>>) attributes {dimension_semantics = [#tpu.dimension_semantics<arbitrary>], iteration_bounds = array<i64: 1>, scalar_prefetch = 0 : i64, scratch_operands = 1 : i64, tpu.core_type = #tpu.core_type<tc>, window_params = [{pipeline_mode = #tpu.pipeline_mode<synchronous>, transform_indices = @transform_0, window_bounds = array<i64: 32, 3>}, {pipeline_mode = #tpu.pipeline_mode<synchronous>, transform_indices = @transform_1, window_bounds = array<i64: 40, 288>}, {pipeline_mode = #tpu.pipeline_mode<synchronous>, transform_indices = @transform_2, window_bounds = array<i64: 8, 72>}, {pipeline_mode = #tpu.pipeline_mode<synchronous>, transform_indices = @transform_3, window_bounds = array<i64: 32, 72>}, {pipeline_mode = #tpu.pipeline_mode<synchronous>, transform_indices = @transform_4, window_bounds = array<i64: 16, 8>}, {pipeline_mode = #tpu.pipeline_mode<synchronous>, transform_indices = @transform_5, window_bounds = array<i64: 8, 8>}]} {
    %c0 = arith.constant 0 : index
    %c0_0 = arith.constant 0 : index
    %0 = vector.load %arg5[%c0, %c0_0] : memref<16x8xf32, #tpu.memory_space<vmem>>, vector<16x8xf32>
    %c0_1 = arith.constant 0 : index
    %c0_2 = arith.constant 0 : index
    %1 = vector.load %arg4[%c0_1, %c0_2] : memref<32x72xf32, #tpu.memory_space<vmem>>, vector<32x72xf32>
    %c0_3 = arith.constant 0 : index
    %c0_4 = arith.constant 0 : index
    %2 = vector.load %arg1[%c0_3, %c0_4] : memref<32x3xf32, #tpu.memory_space<vmem>>, vector<32x3xf32>
    %3 = vector.extract_strided_slice %0 {offsets = [0, 0], sizes = [3, 8], strides = [1, 1]} : vector<16x8xf32> to vector<3x8xf32>
    %cst = arith.constant dense<0.000000e+00> : vector<32x8xf32>
    %4 = tpu.matmul %2, %3, %cst {dimension_numbers = #tpu.dot_dimension_numbers<[1], [0], [0], [1], [0, 0, 1, 1], [], []>} : vector<32x3xf32>, vector<3x8xf32>, vector<32x8xf32> -> vector<32x8xf32>
    %5 = vector.extract_strided_slice %0 {offsets = [3, 0], sizes = [1, 8], strides = [1, 1]} : vector<16x8xf32> to vector<1x8xf32>
    %6 = vector.broadcast %5 : vector<1x8xf32> to vector<32x8xf32>
    %7 = arith.addf %4, %6 : vector<32x8xf32>
    %c0_5 = arith.constant 0 : index
    %c0_6 = arith.constant 0 : index
    %8 = vector.load %arg2[%c0_5, %c0_6] : memref<40x288xf32, #tpu.memory_space<vmem>>, vector<32x288xf32>
    %9 = vector.extract_strided_slice %1 {offsets = [0, 0], sizes = [8, 72], strides = [1, 1]} : vector<32x72xf32> to vector<8x72xf32>
    %cst_7 = arith.constant dense<0.000000e+00> : vector<32x72xf32>
    %10 = tpu.matmul %7, %9, %cst_7 {dimension_numbers = #tpu.dot_dimension_numbers<[1], [0], [0], [1], [0, 0, 1, 1], [], []>} : vector<32x8xf32>, vector<8x72xf32>, vector<32x72xf32> -> vector<32x72xf32>
    %11 = vector.extract_strided_slice %10 {offsets = [0, 0], sizes = [32, 8], strides = [1, 1]} : vector<32x72xf32> to vector<32x8xf32>
    %c0_8 = arith.constant 0 : index
    %c0_9 = arith.constant 0 : index
    %12 = vector.load %arg7[%c0_8, %c0_9] : memref<288x8xf32, #tpu.memory_space<vmem>>, vector<32x8xf32>
    tpu.vector_store %arg7[%c0_8, %c0_9], %11 {strides = array<i32>} : memref<288x8xf32, #tpu.memory_space<vmem>>, vector<32x8xf32>,
    %13 = vector.extract_strided_slice %10 {offsets = [0, 8], sizes = [32, 8], strides = [1, 1]} : vector<32x72xf32> to vector<32x8xf32>
    %c32 = arith.constant 32 : index
    %c0_10 = arith.constant 0 : index
    %14 = vector.load %arg7[%c32, %c0_10] : memref<288x8xf32, #tpu.memory_space<vmem>>, vector<32x8xf32>
    tpu.vector_store %arg7[%c32, %c0_10], %13 {strides = array<i32>} : memref<288x8xf32, #tpu.memory_space<vmem>>, vector<32x8xf32>,
    %15 = vector.extract_strided_slice %10 {offsets = [0, 16], sizes = [32, 8], strides = [1, 1]} : vector<32x72xf32> to vector<32x8xf32>
    %c64 = arith.constant 64 : index
    %c0_11 = arith.constant 0 : index
    %16 = vector.load %arg7[%c64, %c0_11] : memref<288x8xf32, #tpu.memory_space<vmem>>, vector<32x8xf32>
    tpu.vector_store %arg7[%c64, %c0_11], %15 {strides = array<i32>} : memref<288x8xf32, #tpu.memory_space<vmem>>, vector<32x8xf32>,
    %17 = vector.extract_strided_slice %10 {offsets = [0, 24], sizes = [32, 8], strides = [1, 1]} : vector<32x72xf32> to vector<32x8xf32>
    %c96 = arith.constant 96 : index
    %c0_12 = arith.constant 0 : index
    %18 = vector.load %arg7[%c96, %c0_12] : memref<288x8xf32, #tpu.memory_space<vmem>>, vector<32x8xf32>
    tpu.vector_store %arg7[%c96, %c0_12], %17 {strides = array<i32>} : memref<288x8xf32, #tpu.memory_space<vmem>>, vector<32x8xf32>,
    %19 = vector.extract_strided_slice %10 {offsets = [0, 32], sizes = [32, 8], strides = [1, 1]} : vector<32x72xf32> to vector<32x8xf32>
    %c128 = arith.constant 128 : index
    %c0_13 = arith.constant 0 : index
    %20 = vector.load %arg7[%c128, %c0_13] : memref<288x8xf32, #tpu.memory_space<vmem>>, vector<32x8xf32>
    tpu.vector_store %arg7[%c128, %c0_13], %19 {strides = array<i32>} : memref<288x8xf32, #tpu.memory_space<vmem>>, vector<32x8xf32>,
    %21 = vector.extract_strided_slice %10 {offsets = [0, 40], sizes = [32, 8], strides = [1, 1]} : vector<32x72xf32> to vector<32x8xf32>
    %c160 = arith.constant 160 : index
    %c0_14 = arith.constant 0 : index
    %22 = vector.load %arg7[%c160, %c0_14] : memref<288x8xf32, #tpu.memory_space<vmem>>, vector<32x8xf32>
    tpu.vector_store %arg7[%c160, %c0_14], %21 {strides = array<i32>} : memref<288x8xf32, #tpu.memory_space<vmem>>, vector<32x8xf32>,
    %23 = vector.extract_strided_slice %10 {offsets = [0, 48], sizes = [32, 8], strides = [1, 1]} : vector<32x72xf32> to vector<32x8xf32>
    %c192 = arith.constant 192 : index
    %c0_15 = arith.constant 0 : index
    %24 = vector.load %arg7[%c192, %c0_15] : memref<288x8xf32, #tpu.memory_space<vmem>>, vector<32x8xf32>
    tpu.vector_store %arg7[%c192, %c0_15], %23 {strides = array<i32>} : memref<288x8xf32, #tpu.memory_space<vmem>>, vector<32x8xf32>,
    %25 = vector.extract_strided_slice %10 {offsets = [0, 56], sizes = [32, 8], strides = [1, 1]} : vector<32x72xf32> to vector<32x8xf32>
    %c224 = arith.constant 224 : index
    %c0_16 = arith.constant 0 : index
    %26 = vector.load %arg7[%c224, %c0_16] : memref<288x8xf32, #tpu.memory_space<vmem>>, vector<32x8xf32>
    tpu.vector_store %arg7[%c224, %c0_16], %25 {strides = array<i32>} : memref<288x8xf32, #tpu.memory_space<vmem>>, vector<32x8xf32>,
    %27 = vector.extract_strided_slice %10 {offsets = [0, 64], sizes = [32, 8], strides = [1, 1]} : vector<32x72xf32> to vector<32x8xf32>
    %c256 = arith.constant 256 : index
    %c0_17 = arith.constant 0 : index
    %28 = vector.load %arg7[%c256, %c0_17] : memref<288x8xf32, #tpu.memory_space<vmem>>, vector<32x8xf32>
    tpu.vector_store %arg7[%c256, %c0_17], %27 {strides = array<i32>} : memref<288x8xf32, #tpu.memory_space<vmem>>, vector<32x8xf32>,
    %c0_18 = arith.constant 0 : index
    %c0_19 = arith.constant 0 : index
    %29 = vector.load %arg7[%c0_18, %c0_19] : memref<288x8xf32, #tpu.memory_space<vmem>>, vector<288x8xf32>
    %cst_20 = arith.constant dense<0.000000e+00> : vector<32x8xf32>
    %30 = tpu.matmul %8, %29, %cst_20 {dimension_numbers = #tpu.dot_dimension_numbers<[1], [0], [0], [1], [0, 0, 1, 1], [], []>} : vector<32x288xf32>, vector<288x8xf32>, vector<32x8xf32> -> vector<32x8xf32>
    %31 = vector.extract_strided_slice %0 {offsets = [4, 0], sizes = [1, 8], strides = [1, 1]} : vector<16x8xf32> to vector<1x8xf32>
    %32 = vector.broadcast %31 : vector<1x8xf32> to vector<32x8xf32>
    %33 = arith.addf %30, %32 : vector<32x8xf32>
    %cst_21 = arith.constant 0.000000e+00 : f32
    %34 = vector.broadcast %cst_21 : f32 to vector<32x8xf32>
    %35 = arith.cmpf ogt, %33, %34 : vector<32x8xf32>
    %36 = math.exp %33 : vector<32x8xf32>
    %cst_22 = arith.constant 1.000000e+00 : f32
    %37 = vector.broadcast %cst_22 : f32 to vector<32x8xf32>
    %38 = arith.subf %36, %37 : vector<32x8xf32>
    %39 = arith.select %35, %33, %38 : vector<32x8xi1>, vector<32x8xf32>
    %cst_23 = arith.constant dense<0.000000e+00> : vector<8xf32>
    %40 = vector.multi_reduction <add>, %39, %cst_23 [0] : vector<32x8xf32> to vector<8xf32>
    %41 = vector.shape_cast %40 : vector<8xf32> to vector<1x8xf32>
    %cst_24 = arith.constant 3.125000e-02 : f32
    %42 = vector.broadcast %cst_24 : f32 to vector<1x8xf32>
    %43 = arith.mulf %41, %42 : vector<1x8xf32>
    %44 = vector.broadcast %43 : vector<1x8xf32> to vector<32x8xf32>
    %45 = arith.subf %39, %44 : vector<32x8xf32>
    %46 = arith.mulf %45, %45 : vector<32x8xf32>
    %cst_25 = arith.constant dense<0.000000e+00> : vector<8xf32>
    %47 = vector.multi_reduction <add>, %46, %cst_25 [0] : vector<32x8xf32> to vector<8xf32>
    %48 = vector.shape_cast %47 : vector<8xf32> to vector<1x8xf32>
    %cst_26 = arith.constant 3.125000e-02 : f32
    %49 = vector.broadcast %cst_26 : f32 to vector<1x8xf32>
    %50 = arith.mulf %48, %49 : vector<1x8xf32>
    %cst_27 = arith.constant 9.99999974E-6 : f32
    %51 = vector.broadcast %cst_27 : f32 to vector<1x8xf32>
    %52 = arith.addf %50, %51 : vector<1x8xf32>
    %53 = math.rsqrt %52 : vector<1x8xf32>
    %54 = vector.extract_strided_slice %0 {offsets = [5, 0], sizes = [1, 8], strides = [1, 1]} : vector<16x8xf32> to vector<1x8xf32>
    %55 = arith.mulf %53, %54 : vector<1x8xf32>
    %56 = vector.broadcast %55 : vector<1x8xf32> to vector<32x8xf32>
    %57 = arith.mulf %45, %56 : vector<32x8xf32>
    %58 = vector.extract_strided_slice %0 {offsets = [6, 0], sizes = [1, 8], strides = [1, 1]} : vector<16x8xf32> to vector<1x8xf32>
    %59 = vector.broadcast %58 : vector<1x8xf32> to vector<32x8xf32>
    %60 = arith.addf %57, %59 : vector<32x8xf32>
    %c32_28 = arith.constant 32 : index
    %c0_29 = arith.constant 0 : index
    %61 = vector.load %arg2[%c32_28, %c0_29] : memref<40x288xf32, #tpu.memory_space<vmem>>, vector<8x288xf32>
    %62 = vector.extract_strided_slice %1 {offsets = [8, 0], sizes = [8, 72], strides = [1, 1]} : vector<32x72xf32> to vector<8x72xf32>
    %cst_30 = arith.constant dense<0.000000e+00> : vector<32x72xf32>
    %63 = tpu.matmul %60, %62, %cst_30 {dimension_numbers = #tpu.dot_dimension_numbers<[1], [0], [0], [1], [0, 0, 1, 1], [], []>} : vector<32x8xf32>, vector<8x72xf32>, vector<32x72xf32> -> vector<32x72xf32>
    %64 = vector.extract_strided_slice %63 {offsets = [0, 0], sizes = [32, 8], strides = [1, 1]} : vector<32x72xf32> to vector<32x8xf32>
    %c0_31 = arith.constant 0 : index
    %c0_32 = arith.constant 0 : index
    %65 = vector.load %arg7[%c0_31, %c0_32] : memref<288x8xf32, #tpu.memory_space<vmem>>, vector<32x8xf32>
    tpu.vector_store %arg7[%c0_31, %c0_32], %64 {strides = array<i32>} : memref<288x8xf32, #tpu.memory_space<vmem>>, vector<32x8xf32>,
    %66 = vector.extract_strided_slice %63 {offsets = [0, 8], sizes = [32, 8], strides = [1, 1]} : vector<32x72xf32> to vector<32x8xf32>
    %c32_33 = arith.constant 32 : index
    %c0_34 = arith.constant 0 : index
    %67 = vector.load %arg7[%c32_33, %c0_34] : memref<288x8xf32, #tpu.memory_space<vmem>>, vector<32x8xf32>
    tpu.vector_store %arg7[%c32_33, %c0_34], %66 {strides = array<i32>} : memref<288x8xf32, #tpu.memory_space<vmem>>, vector<32x8xf32>,
    %68 = vector.extract_strided_slice %63 {offsets = [0, 16], sizes = [32, 8], strides = [1, 1]} : vector<32x72xf32> to vector<32x8xf32>
    %c64_35 = arith.constant 64 : index
    %c0_36 = arith.constant 0 : index
    %69 = vector.load %arg7[%c64_35, %c0_36] : memref<288x8xf32, #tpu.memory_space<vmem>>, vector<32x8xf32>
    tpu.vector_store %arg7[%c64_35, %c0_36], %68 {strides = array<i32>} : memref<288x8xf32, #tpu.memory_space<vmem>>, vector<32x8xf32>,
    %70 = vector.extract_strided_slice %63 {offsets = [0, 24], sizes = [32, 8], strides = [1, 1]} : vector<32x72xf32> to vector<32x8xf32>
    %c96_37 = arith.constant 96 : index
    %c0_38 = arith.constant 0 : index
    %71 = vector.load %arg7[%c96_37, %c0_38] : memref<288x8xf32, #tpu.memory_space<vmem>>, vector<32x8xf32>
    tpu.vector_store %arg7[%c96_37, %c0_38], %70 {strides = array<i32>} : memref<288x8xf32, #tpu.memory_space<vmem>>, vector<32x8xf32>,
    %72 = vector.extract_strided_slice %63 {offsets = [0, 32], sizes = [32, 8], strides = [1, 1]} : vector<32x72xf32> to vector<32x8xf32>
    %c128_39 = arith.constant 128 : index
    %c0_40 = arith.constant 0 : index
    %73 = vector.load %arg7[%c128_39, %c0_40] : memref<288x8xf32, #tpu.memory_space<vmem>>, vector<32x8xf32>
    tpu.vector_store %arg7[%c128_39, %c0_40], %72 {strides = array<i32>} : memref<288x8xf32, #tpu.memory_space<vmem>>, vector<32x8xf32>,
    %74 = vector.extract_strided_slice %63 {offsets = [0, 40], sizes = [32, 8], strides = [1, 1]} : vector<32x72xf32> to vector<32x8xf32>
    %c160_41 = arith.constant 160 : index
    %c0_42 = arith.constant 0 : index
    %75 = vector.load %arg7[%c160_41, %c0_42] : memref<288x8xf32, #tpu.memory_space<vmem>>, vector<32x8xf32>
    tpu.vector_store %arg7[%c160_41, %c0_42], %74 {strides = array<i32>} : memref<288x8xf32, #tpu.memory_space<vmem>>, vector<32x8xf32>,
    %76 = vector.extract_strided_slice %63 {offsets = [0, 48], sizes = [32, 8], strides = [1, 1]} : vector<32x72xf32> to vector<32x8xf32>
    %c192_43 = arith.constant 192 : index
    %c0_44 = arith.constant 0 : index
    %77 = vector.load %arg7[%c192_43, %c0_44] : memref<288x8xf32, #tpu.memory_space<vmem>>, vector<32x8xf32>
    tpu.vector_store %arg7[%c192_43, %c0_44], %76 {strides = array<i32>} : memref<288x8xf32, #tpu.memory_space<vmem>>, vector<32x8xf32>,
    %78 = vector.extract_strided_slice %63 {offsets = [0, 56], sizes = [32, 8], strides = [1, 1]} : vector<32x72xf32> to vector<32x8xf32>
    %c224_45 = arith.constant 224 : index
    %c0_46 = arith.constant 0 : index
    %79 = vector.load %arg7[%c224_45, %c0_46] : memref<288x8xf32, #tpu.memory_space<vmem>>, vector<32x8xf32>
    tpu.vector_store %arg7[%c224_45, %c0_46], %78 {strides = array<i32>} : memref<288x8xf32, #tpu.memory_space<vmem>>, vector<32x8xf32>,
    %80 = vector.extract_strided_slice %63 {offsets = [0, 64], sizes = [32, 8], strides = [1, 1]} : vector<32x72xf32> to vector<32x8xf32>
    %c256_47 = arith.constant 256 : index
    %c0_48 = arith.constant 0 : index
    %81 = vector.load %arg7[%c256_47, %c0_48] : memref<288x8xf32, #tpu.memory_space<vmem>>, vector<32x8xf32>
    tpu.vector_store %arg7[%c256_47, %c0_48], %80 {strides = array<i32>} : memref<288x8xf32, #tpu.memory_space<vmem>>, vector<32x8xf32>,
    %c0_49 = arith.constant 0 : index
    %c0_50 = arith.constant 0 : index
    %82 = vector.load %arg7[%c0_49, %c0_50] : memref<288x8xf32, #tpu.memory_space<vmem>>, vector<288x8xf32>
    %cst_51 = arith.constant dense<0.000000e+00> : vector<8x8xf32>
    %83 = tpu.matmul %61, %82, %cst_51 {dimension_numbers = #tpu.dot_dimension_numbers<[1], [0], [0], [1], [0, 0, 1, 1], [], []>} : vector<8x288xf32>, vector<288x8xf32>, vector<8x8xf32> -> vector<8x8xf32>
    %84 = vector.extract_strided_slice %0 {offsets = [7, 0], sizes = [1, 8], strides = [1, 1]} : vector<16x8xf32> to vector<1x8xf32>
    %85 = vector.broadcast %84 : vector<1x8xf32> to vector<8x8xf32>
    %86 = arith.addf %83, %85 : vector<8x8xf32>
    %cst_52 = arith.constant 0.000000e+00 : f32
    %87 = vector.broadcast %cst_52 : f32 to vector<8x8xf32>
    %88 = arith.cmpf ogt, %86, %87 : vector<8x8xf32>
    %89 = math.exp %86 : vector<8x8xf32>
    %cst_53 = arith.constant 1.000000e+00 : f32
    %90 = vector.broadcast %cst_53 : f32 to vector<8x8xf32>
    %91 = arith.subf %89, %90 : vector<8x8xf32>
    %92 = arith.select %88, %86, %91 : vector<8x8xi1>, vector<8x8xf32>
    %cst_54 = arith.constant dense<0.000000e+00> : vector<8xf32>
    %93 = vector.multi_reduction <add>, %92, %cst_54 [0] : vector<8x8xf32> to vector<8xf32>
    %94 = vector.shape_cast %93 : vector<8xf32> to vector<1x8xf32>
    %cst_55 = arith.constant 1.250000e-01 : f32
    %95 = vector.broadcast %cst_55 : f32 to vector<1x8xf32>
    %96 = arith.mulf %94, %95 : vector<1x8xf32>
    %97 = vector.broadcast %96 : vector<1x8xf32> to vector<8x8xf32>
    %98 = arith.subf %92, %97 : vector<8x8xf32>
    %99 = arith.mulf %98, %98 : vector<8x8xf32>
    %cst_56 = arith.constant dense<0.000000e+00> : vector<8xf32>
    %100 = vector.multi_reduction <add>, %99, %cst_56 [0] : vector<8x8xf32> to vector<8xf32>
    %101 = vector.shape_cast %100 : vector<8xf32> to vector<1x8xf32>
    %cst_57 = arith.constant 1.250000e-01 : f32
    %102 = vector.broadcast %cst_57 : f32 to vector<1x8xf32>
    %103 = arith.mulf %101, %102 : vector<1x8xf32>
    %cst_58 = arith.constant 9.99999974E-6 : f32
    %104 = vector.broadcast %cst_58 : f32 to vector<1x8xf32>
    %105 = arith.addf %103, %104 : vector<1x8xf32>
    %106 = math.rsqrt %105 : vector<1x8xf32>
    %107 = vector.extract_strided_slice %0 {offsets = [8, 0], sizes = [1, 8], strides = [1, 1]} : vector<16x8xf32> to vector<1x8xf32>
    %108 = arith.mulf %106, %107 : vector<1x8xf32>
    %109 = vector.broadcast %108 : vector<1x8xf32> to vector<8x8xf32>
    %110 = arith.mulf %98, %109 : vector<8x8xf32>
    %111 = vector.extract_strided_slice %0 {offsets = [9, 0], sizes = [1, 8], strides = [1, 1]} : vector<16x8xf32> to vector<1x8xf32>
    %112 = vector.broadcast %111 : vector<1x8xf32> to vector<8x8xf32>
    %113 = arith.addf %110, %112 : vector<8x8xf32>
    %c0_59 = arith.constant 0 : index
    %c0_60 = arith.constant 0 : index
    %114 = vector.load %arg3[%c0_59, %c0_60] : memref<8x72xf32, #tpu.memory_space<vmem>>, vector<8x72xf32>
    %115 = vector.extract_strided_slice %1 {offsets = [16, 0], sizes = [8, 72], strides = [1, 1]} : vector<32x72xf32> to vector<8x72xf32>
    %cst_61 = arith.constant dense<0.000000e+00> : vector<8x72xf32>
    %116 = tpu.matmul %113, %115, %cst_61 {dimension_numbers = #tpu.dot_dimension_numbers<[1], [0], [0], [1], [0, 0, 1, 1], [], []>} : vector<8x8xf32>, vector<8x72xf32>, vector<8x72xf32> -> vector<8x72xf32>
    %117 = vector.extract_strided_slice %116 {offsets = [0, 0], sizes = [8, 8], strides = [1, 1]} : vector<8x72xf32> to vector<8x8xf32>
    %c0_62 = arith.constant 0 : index
    %c0_63 = arith.constant 0 : index
    %118 = vector.load %arg7[%c0_62, %c0_63] : memref<288x8xf32, #tpu.memory_space<vmem>>, vector<8x8xf32>
    tpu.vector_store %arg7[%c0_62, %c0_63], %117 {strides = array<i32>} : memref<288x8xf32, #tpu.memory_space<vmem>>, vector<8x8xf32>,
    %119 = vector.extract_strided_slice %116 {offsets = [0, 8], sizes = [8, 8], strides = [1, 1]} : vector<8x72xf32> to vector<8x8xf32>
    %c8 = arith.constant 8 : index
    %c0_64 = arith.constant 0 : index
    %120 = vector.load %arg7[%c8, %c0_64] : memref<288x8xf32, #tpu.memory_space<vmem>>, vector<8x8xf32>
    tpu.vector_store %arg7[%c8, %c0_64], %119 {strides = array<i32>} : memref<288x8xf32, #tpu.memory_space<vmem>>, vector<8x8xf32>,
    %121 = vector.extract_strided_slice %116 {offsets = [0, 16], sizes = [8, 8], strides = [1, 1]} : vector<8x72xf32> to vector<8x8xf32>
    %c16 = arith.constant 16 : index
    %c0_65 = arith.constant 0 : index
    %122 = vector.load %arg7[%c16, %c0_65] : memref<288x8xf32, #tpu.memory_space<vmem>>, vector<8x8xf32>
    tpu.vector_store %arg7[%c16, %c0_65], %121 {strides = array<i32>} : memref<288x8xf32, #tpu.memory_space<vmem>>, vector<8x8xf32>,
    %123 = vector.extract_strided_slice %116 {offsets = [0, 24], sizes = [8, 8], strides = [1, 1]} : vector<8x72xf32> to vector<8x8xf32>
    %c24 = arith.constant 24 : index
    %c0_66 = arith.constant 0 : index
    %124 = vector.load %arg7[%c24, %c0_66] : memref<288x8xf32, #tpu.memory_space<vmem>>, vector<8x8xf32>
    tpu.vector_store %arg7[%c24, %c0_66], %123 {strides = array<i32>} : memref<288x8xf32, #tpu.memory_space<vmem>>, vector<8x8xf32>,
    %125 = vector.extract_strided_slice %116 {offsets = [0, 32], sizes = [8, 8], strides = [1, 1]} : vector<8x72xf32> to vector<8x8xf32>
    %c32_67 = arith.constant 32 : index
    %c0_68 = arith.constant 0 : index
    %126 = vector.load %arg7[%c32_67, %c0_68] : memref<288x8xf32, #tpu.memory_space<vmem>>, vector<8x8xf32>
    tpu.vector_store %arg7[%c32_67, %c0_68], %125 {strides = array<i32>} : memref<288x8xf32, #tpu.memory_space<vmem>>, vector<8x8xf32>,
    %127 = vector.extract_strided_slice %116 {offsets = [0, 40], sizes = [8, 8], strides = [1, 1]} : vector<8x72xf32> to vector<8x8xf32>
    %c40 = arith.constant 40 : index
    %c0_69 = arith.constant 0 : index
    %128 = vector.load %arg7[%c40, %c0_69] : memref<288x8xf32, #tpu.memory_space<vmem>>, vector<8x8xf32>
    tpu.vector_store %arg7[%c40, %c0_69], %127 {strides = array<i32>} : memref<288x8xf32, #tpu.memory_space<vmem>>, vector<8x8xf32>,
    %129 = vector.extract_strided_slice %116 {offsets = [0, 48], sizes = [8, 8], strides = [1, 1]} : vector<8x72xf32> to vector<8x8xf32>
    %c48 = arith.constant 48 : index
    %c0_70 = arith.constant 0 : index
    %130 = vector.load %arg7[%c48, %c0_70] : memref<288x8xf32, #tpu.memory_space<vmem>>, vector<8x8xf32>
    tpu.vector_store %arg7[%c48, %c0_70], %129 {strides = array<i32>} : memref<288x8xf32, #tpu.memory_space<vmem>>, vector<8x8xf32>,
    %131 = vector.extract_strided_slice %116 {offsets = [0, 56], sizes = [8, 8], strides = [1, 1]} : vector<8x72xf32> to vector<8x8xf32>
    %c56 = arith.constant 56 : index
    %c0_71 = arith.constant 0 : index
    %132 = vector.load %arg7[%c56, %c0_71] : memref<288x8xf32, #tpu.memory_space<vmem>>, vector<8x8xf32>
    tpu.vector_store %arg7[%c56, %c0_71], %131 {strides = array<i32>} : memref<288x8xf32, #tpu.memory_space<vmem>>, vector<8x8xf32>,
    %133 = vector.extract_strided_slice %116 {offsets = [0, 64], sizes = [8, 8], strides = [1, 1]} : vector<8x72xf32> to vector<8x8xf32>
    %c64_72 = arith.constant 64 : index
    %c0_73 = arith.constant 0 : index
    %134 = vector.load %arg7[%c64_72, %c0_73] : memref<288x8xf32, #tpu.memory_space<vmem>>, vector<8x8xf32>
    tpu.vector_store %arg7[%c64_72, %c0_73], %133 {strides = array<i32>} : memref<288x8xf32, #tpu.memory_space<vmem>>, vector<8x8xf32>,
    %c0_74 = arith.constant 0 : index
    %c0_75 = arith.constant 0 : index
    %135 = vector.load %arg7[%c0_74, %c0_75] : memref<288x8xf32, #tpu.memory_space<vmem>>, vector<72x8xf32>
    %cst_76 = arith.constant dense<0.000000e+00> : vector<8x8xf32>
    %136 = tpu.matmul %114, %135, %cst_76 {dimension_numbers = #tpu.dot_dimension_numbers<[1], [0], [0], [1], [0, 0, 1, 1], [], []>} : vector<8x72xf32>, vector<72x8xf32>, vector<8x8xf32> -> vector<8x8xf32>
    %137 = vector.extract_strided_slice %0 {offsets = [10, 0], sizes = [1, 8], strides = [1, 1]} : vector<16x8xf32> to vector<1x8xf32>
    %138 = vector.broadcast %137 : vector<1x8xf32> to vector<8x8xf32>
    %139 = arith.addf %136, %138 : vector<8x8xf32>
    %cst_77 = arith.constant 0.000000e+00 : f32
    %140 = vector.broadcast %cst_77 : f32 to vector<8x8xf32>
    %141 = arith.cmpf ogt, %139, %140 : vector<8x8xf32>
    %142 = math.exp %139 : vector<8x8xf32>
    %cst_78 = arith.constant 1.000000e+00 : f32
    %143 = vector.broadcast %cst_78 : f32 to vector<8x8xf32>
    %144 = arith.subf %142, %143 : vector<8x8xf32>
    %145 = arith.select %141, %139, %144 : vector<8x8xi1>, vector<8x8xf32>
    %cst_79 = arith.constant dense<0.000000e+00> : vector<8xf32>
    %146 = vector.multi_reduction <add>, %145, %cst_79 [0] : vector<8x8xf32> to vector<8xf32>
    %147 = vector.shape_cast %146 : vector<8xf32> to vector<1x8xf32>
    %cst_80 = arith.constant 1.250000e-01 : f32
    %148 = vector.broadcast %cst_80 : f32 to vector<1x8xf32>
    %149 = arith.mulf %147, %148 : vector<1x8xf32>
    %150 = vector.broadcast %149 : vector<1x8xf32> to vector<8x8xf32>
    %151 = arith.subf %145, %150 : vector<8x8xf32>
    %152 = arith.mulf %151, %151 : vector<8x8xf32>
    %cst_81 = arith.constant dense<0.000000e+00> : vector<8xf32>
    %153 = vector.multi_reduction <add>, %152, %cst_81 [0] : vector<8x8xf32> to vector<8xf32>
    %154 = vector.shape_cast %153 : vector<8xf32> to vector<1x8xf32>
    %cst_82 = arith.constant 1.250000e-01 : f32
    %155 = vector.broadcast %cst_82 : f32 to vector<1x8xf32>
    %156 = arith.mulf %154, %155 : vector<1x8xf32>
    %cst_83 = arith.constant 9.99999974E-6 : f32
    %157 = vector.broadcast %cst_83 : f32 to vector<1x8xf32>
    %158 = arith.addf %156, %157 : vector<1x8xf32>
    %159 = math.rsqrt %158 : vector<1x8xf32>
    %160 = vector.extract_strided_slice %0 {offsets = [11, 0], sizes = [1, 8], strides = [1, 1]} : vector<16x8xf32> to vector<1x8xf32>
    %161 = arith.mulf %159, %160 : vector<1x8xf32>
    %162 = vector.broadcast %161 : vector<1x8xf32> to vector<8x8xf32>
    %163 = arith.mulf %151, %162 : vector<8x8xf32>
    %164 = vector.extract_strided_slice %0 {offsets = [12, 0], sizes = [1, 8], strides = [1, 1]} : vector<16x8xf32> to vector<1x8xf32>
    %165 = vector.broadcast %164 : vector<1x8xf32> to vector<8x8xf32>
    %166 = arith.addf %163, %165 : vector<8x8xf32>
    %c0_84 = arith.constant 0 : index
    %c0_85 = arith.constant 0 : index
    %167 = vector.load %arg3[%c0_84, %c0_85] : memref<8x72xf32, #tpu.memory_space<vmem>>, vector<8x72xf32>
    %168 = vector.extract_strided_slice %1 {offsets = [24, 0], sizes = [8, 72], strides = [1, 1]} : vector<32x72xf32> to vector<8x72xf32>
    %cst_86 = arith.constant dense<0.000000e+00> : vector<8x72xf32>
    %169 = tpu.matmul %166, %168, %cst_86 {dimension_numbers = #tpu.dot_dimension_numbers<[1], [0], [0], [1], [0, 0, 1, 1], [], []>} : vector<8x8xf32>, vector<8x72xf32>, vector<8x72xf32> -> vector<8x72xf32>
    %170 = vector.extract_strided_slice %169 {offsets = [0, 0], sizes = [8, 8], strides = [1, 1]} : vector<8x72xf32> to vector<8x8xf32>
    %c0_87 = arith.constant 0 : index
    %c0_88 = arith.constant 0 : index
    %171 = vector.load %arg7[%c0_87, %c0_88] : memref<288x8xf32, #tpu.memory_space<vmem>>, vector<8x8xf32>
    tpu.vector_store %arg7[%c0_87, %c0_88], %170 {strides = array<i32>} : memref<288x8xf32, #tpu.memory_space<vmem>>, vector<8x8xf32>,
    %172 = vector.extract_strided_slice %169 {offsets = [0, 8], sizes = [8, 8], strides = [1, 1]} : vector<8x72xf32> to vector<8x8xf32>
    %c8_89 = arith.constant 8 : index
    %c0_90 = arith.constant 0 : index
    %173 = vector.load %arg7[%c8_89, %c0_90] : memref<288x8xf32, #tpu.memory_space<vmem>>, vector<8x8xf32>
    tpu.vector_store %arg7[%c8_89, %c0_90], %172 {strides = array<i32>} : memref<288x8xf32, #tpu.memory_space<vmem>>, vector<8x8xf32>,
    %174 = vector.extract_strided_slice %169 {offsets = [0, 16], sizes = [8, 8], strides = [1, 1]} : vector<8x72xf32> to vector<8x8xf32>
    %c16_91 = arith.constant 16 : index
    %c0_92 = arith.constant 0 : index
    %175 = vector.load %arg7[%c16_91, %c0_92] : memref<288x8xf32, #tpu.memory_space<vmem>>, vector<8x8xf32>
    tpu.vector_store %arg7[%c16_91, %c0_92], %174 {strides = array<i32>} : memref<288x8xf32, #tpu.memory_space<vmem>>, vector<8x8xf32>,
    %176 = vector.extract_strided_slice %169 {offsets = [0, 24], sizes = [8, 8], strides = [1, 1]} : vector<8x72xf32> to vector<8x8xf32>
    %c24_93 = arith.constant 24 : index
    %c0_94 = arith.constant 0 : index
    %177 = vector.load %arg7[%c24_93, %c0_94] : memref<288x8xf32, #tpu.memory_space<vmem>>, vector<8x8xf32>
    tpu.vector_store %arg7[%c24_93, %c0_94], %176 {strides = array<i32>} : memref<288x8xf32, #tpu.memory_space<vmem>>, vector<8x8xf32>,
    %178 = vector.extract_strided_slice %169 {offsets = [0, 32], sizes = [8, 8], strides = [1, 1]} : vector<8x72xf32> to vector<8x8xf32>
    %c32_95 = arith.constant 32 : index
    %c0_96 = arith.constant 0 : index
    %179 = vector.load %arg7[%c32_95, %c0_96] : memref<288x8xf32, #tpu.memory_space<vmem>>, vector<8x8xf32>
    tpu.vector_store %arg7[%c32_95, %c0_96], %178 {strides = array<i32>} : memref<288x8xf32, #tpu.memory_space<vmem>>, vector<8x8xf32>,
    %180 = vector.extract_strided_slice %169 {offsets = [0, 40], sizes = [8, 8], strides = [1, 1]} : vector<8x72xf32> to vector<8x8xf32>
    %c40_97 = arith.constant 40 : index
    %c0_98 = arith.constant 0 : index
    %181 = vector.load %arg7[%c40_97, %c0_98] : memref<288x8xf32, #tpu.memory_space<vmem>>, vector<8x8xf32>
    tpu.vector_store %arg7[%c40_97, %c0_98], %180 {strides = array<i32>} : memref<288x8xf32, #tpu.memory_space<vmem>>, vector<8x8xf32>,
    %182 = vector.extract_strided_slice %169 {offsets = [0, 48], sizes = [8, 8], strides = [1, 1]} : vector<8x72xf32> to vector<8x8xf32>
    %c48_99 = arith.constant 48 : index
    %c0_100 = arith.constant 0 : index
    %183 = vector.load %arg7[%c48_99, %c0_100] : memref<288x8xf32, #tpu.memory_space<vmem>>, vector<8x8xf32>
    tpu.vector_store %arg7[%c48_99, %c0_100], %182 {strides = array<i32>} : memref<288x8xf32, #tpu.memory_space<vmem>>, vector<8x8xf32>,
    %184 = vector.extract_strided_slice %169 {offsets = [0, 56], sizes = [8, 8], strides = [1, 1]} : vector<8x72xf32> to vector<8x8xf32>
    %c56_101 = arith.constant 56 : index
    %c0_102 = arith.constant 0 : index
    %185 = vector.load %arg7[%c56_101, %c0_102] : memref<288x8xf32, #tpu.memory_space<vmem>>, vector<8x8xf32>
    tpu.vector_store %arg7[%c56_101, %c0_102], %184 {strides = array<i32>} : memref<288x8xf32, #tpu.memory_space<vmem>>, vector<8x8xf32>,
    %186 = vector.extract_strided_slice %169 {offsets = [0, 64], sizes = [8, 8], strides = [1, 1]} : vector<8x72xf32> to vector<8x8xf32>
    %c64_103 = arith.constant 64 : index
    %c0_104 = arith.constant 0 : index
    %187 = vector.load %arg7[%c64_103, %c0_104] : memref<288x8xf32, #tpu.memory_space<vmem>>, vector<8x8xf32>
    tpu.vector_store %arg7[%c64_103, %c0_104], %186 {strides = array<i32>} : memref<288x8xf32, #tpu.memory_space<vmem>>, vector<8x8xf32>,
    %c0_105 = arith.constant 0 : index
    %c0_106 = arith.constant 0 : index
    %188 = vector.load %arg7[%c0_105, %c0_106] : memref<288x8xf32, #tpu.memory_space<vmem>>, vector<72x8xf32>
    %cst_107 = arith.constant dense<0.000000e+00> : vector<8x8xf32>
    %189 = tpu.matmul %167, %188, %cst_107 {dimension_numbers = #tpu.dot_dimension_numbers<[1], [0], [0], [1], [0, 0, 1, 1], [], []>} : vector<8x72xf32>, vector<72x8xf32>, vector<8x8xf32> -> vector<8x8xf32>
    %190 = vector.extract_strided_slice %0 {offsets = [13, 0], sizes = [1, 8], strides = [1, 1]} : vector<16x8xf32> to vector<1x8xf32>
    %191 = vector.broadcast %190 : vector<1x8xf32> to vector<8x8xf32>
    %192 = arith.addf %189, %191 : vector<8x8xf32>
    %cst_108 = arith.constant 0.000000e+00 : f32
    %193 = vector.broadcast %cst_108 : f32 to vector<8x8xf32>
    %194 = arith.cmpf ogt, %192, %193 : vector<8x8xf32>
    %195 = math.exp %192 : vector<8x8xf32>
    %cst_109 = arith.constant 1.000000e+00 : f32
    %196 = vector.broadcast %cst_109 : f32 to vector<8x8xf32>
    %197 = arith.subf %195, %196 : vector<8x8xf32>
    %198 = arith.select %194, %192, %197 : vector<8x8xi1>, vector<8x8xf32>
    %cst_110 = arith.constant dense<0.000000e+00> : vector<8xf32>
    %199 = vector.multi_reduction <add>, %198, %cst_110 [0] : vector<8x8xf32> to vector<8xf32>
    %200 = vector.shape_cast %199 : vector<8xf32> to vector<1x8xf32>
    %cst_111 = arith.constant 1.250000e-01 : f32
    %201 = vector.broadcast %cst_111 : f32 to vector<1x8xf32>
    %202 = arith.mulf %200, %201 : vector<1x8xf32>
    %203 = vector.broadcast %202 : vector<1x8xf32> to vector<8x8xf32>
    %204 = arith.subf %198, %203 : vector<8x8xf32>
    %205 = arith.mulf %204, %204 : vector<8x8xf32>
    %cst_112 = arith.constant dense<0.000000e+00> : vector<8xf32>
    %206 = vector.multi_reduction <add>, %205, %cst_112 [0] : vector<8x8xf32> to vector<8xf32>
    %207 = vector.shape_cast %206 : vector<8xf32> to vector<1x8xf32>
    %cst_113 = arith.constant 1.250000e-01 : f32
    %208 = vector.broadcast %cst_113 : f32 to vector<1x8xf32>
    %209 = arith.mulf %207, %208 : vector<1x8xf32>
    %cst_114 = arith.constant 9.99999974E-6 : f32
    %210 = vector.broadcast %cst_114 : f32 to vector<1x8xf32>
    %211 = arith.addf %209, %210 : vector<1x8xf32>
    %212 = math.rsqrt %211 : vector<1x8xf32>
    %213 = vector.extract_strided_slice %0 {offsets = [14, 0], sizes = [1, 8], strides = [1, 1]} : vector<16x8xf32> to vector<1x8xf32>
    %214 = arith.mulf %212, %213 : vector<1x8xf32>
    %215 = vector.broadcast %214 : vector<1x8xf32> to vector<8x8xf32>
    %216 = arith.mulf %204, %215 : vector<8x8xf32>
    %217 = vector.extract_strided_slice %0 {offsets = [15, 0], sizes = [1, 8], strides = [1, 1]} : vector<16x8xf32> to vector<1x8xf32>
    %218 = vector.broadcast %217 : vector<1x8xf32> to vector<8x8xf32>
    %219 = arith.addf %216, %218 : vector<8x8xf32>
    %c0_115 = arith.constant 0 : index
    %c0_116 = arith.constant 0 : index
    %220 = vector.load %arg6[%c0_115, %c0_116] : memref<8x8xf32, #tpu.memory_space<vmem>>, vector<8x8xf32>
    tpu.vector_store %arg6[%c0_115, %c0_116], %219 {strides = array<i32>} : memref<8x8xf32, #tpu.memory_space<vmem>>, vector<8x8xf32>,
    return
  }
  func.func @transform_0(%arg0: i32) -> (i32, i32) {
    %c0_i32 = arith.constant 0 : i32
    %c0_i32_0 = arith.constant 0 : i32
    %c0_i32_1 = arith.constant 0 : i32
    return %c0_i32, %c0_i32_0 : i32, i32
  }
  func.func @transform_1(%arg0: i32) -> (i32, i32) {
    %c0_i32 = arith.constant 0 : i32
    %c0_i32_0 = arith.constant 0 : i32
    %c0_i32_1 = arith.constant 0 : i32
    return %c0_i32, %c0_i32_0 : i32, i32
  }
  func.func @transform_2(%arg0: i32) -> (i32, i32) {
    %c0_i32 = arith.constant 0 : i32
    %c0_i32_0 = arith.constant 0 : i32
    %c0_i32_1 = arith.constant 0 : i32
    return %c0_i32, %c0_i32_0 : i32, i32
  }
  func.func @transform_3(%arg0: i32) -> (i32, i32) {
    %c0_i32 = arith.constant 0 : i32
    %c0_i32_0 = arith.constant 0 : i32
    %c0_i32_1 = arith.constant 0 : i32
    return %c0_i32, %c0_i32_0 : i32, i32
  }
  func.func @transform_4(%arg0: i32) -> (i32, i32) {
    %c0_i32 = arith.constant 0 : i32
    %c0_i32_0 = arith.constant 0 : i32
    %c0_i32_1 = arith.constant 0 : i32
    return %c0_i32, %c0_i32_0 : i32, i32
  }
  func.func @transform_5(%arg0: i32) -> (i32, i32) {
    %c0_i32 = arith.constant 0 : i32
    %c0_i32_0 = arith.constant 0 : i32
    %c0_i32_1 = arith.constant 0 : i32
    return %c0_i32, %c0_i32_0 : i32, i32
  }
}

</mosaic_0001>

<llo_original>
// kernel: encoder_forward.1
$region0: #{encoder_forward.1}
  #allocation0 [shape = 'u32[]', space=smem, size = 0x4, offset = 0x4, fixed_abs, tag = 'smem constant byte address 0x4 - core index']
  #allocation1 [shape = 'u32[72,128]{1,0:T(1,128)}', space=vmem, size = 0x9000, scoped, tag = 'internal scratch']
  #allocation2 [shape = 'f32[288,8]{1,0:T(8,128)}', space=vmem, size = 0x24000, scoped, tag = 'scratch operand']
  %s0 = inlined_call_operand.vmem [shape: f32[32,3], index: 0, kind: input, shape index: {}]
  %s1 = inlined_call_operand.hbm [shape: f32[40,288], index: 1, kind: input, shape index: {}]
  %s2 = inlined_call_operand.vmem [shape: f32[8,72], index: 2, kind: input, shape index: {}]
  %s3 = inlined_call_operand.vmem [shape: f32[32,72], index: 3, kind: input, shape index: {}]
  %s4 = inlined_call_operand.vmem [shape: f32[16,8], index: 4, kind: input, shape index: {}]
  %s5 = inlined_call_operand.hbm [shape: f32[8,8], index: 5, kind: output, shape index: {}]
  %s6 = sld [smem:[#allocation0]]
  $region34: #{encoder_forward.1} parent=0
    _
  %s8 = ssub.s32 1, %s6
  %s9 = scalar_select 0, %s8, %s6
  $region1: #{encoder_forward.1} parent=0
    #allocation3 [shape = 'u8[61440]{0}', space=vmem, size = 0xf000, scoped, tag = 'input window, operand 1, single buffered']
    #allocation4 [shape = 's32[1]{0}', space=sflag, size = 0x4, scoped, tag = 'scoped memory for encoder_forward.1']
    #allocation5 [shape = 's32[1]{0}', space=sflag, size = 0x4, scoped, tag = 'scoped memory for encoder_forward.1']
    #allocation6 [shape = 'u8[4096]{0}', space=vmem, size = 0x1000, scoped, tag = 'output window, operand 0, single buffered']
    %10 = vsyncpa [#allocation4], 0
    %11 = vsyncpa [#allocation5], 0
    // Predicated region
    $region2: #{encoder_forward.1} parent=1 // pred_check
      _
    $region3: #{encoder_forward.1} parent=1 // pred_check_branch
      %13 = sbr.rel (0) target = $region5
    $region4: #{encoder_forward.1} parent=1 // pred_region
      _
    $region5: #{encoder_forward.1} parent=1 // pred_fallthru
      _
    // Predicated region
    $region6: #{encoder_forward.1} parent=1 // pred_check
      _
    $region7: #{encoder_forward.1} parent=1 // pred_check_branch
      %15 = sbr.rel (0) target = $region9
    $region8: #{encoder_forward.1} parent=1 // pred_region
      %17 = vsyncadd [#allocation4], 0
      %s18 = sshll.u32 %s1, 4
      %s19 = int_to_ptr.hbm [resolvable:$true] %s18
      %s20 = sshll.u32 [#allocation3], 4
      %s21 = int_to_ptr.vmem [resolvable:$true] %s20
      %26 = dma.hbm_to_vmem [thread:$0]  %s19, 1920, %s21, [#allocation4], 384, 384, 24
    $region9: #{encoder_forward.1} parent=1 // pred_fallthru
      _
    // Predicated region
    $region10: #{encoder_forward.1} parent=1 // pred_check
      _
    $region11: #{encoder_forward.1} parent=1 // pred_check_branch
      %28 = sbr.rel (0) target = $region13
    $region12: #{encoder_forward.1} parent=1 // pred_region
      _
    $region13: #{encoder_forward.1} parent=1 // pred_fallthru
      _
    // Predicated region
    $region14: #{encoder_forward.1} parent=1 // pred_check
      _
    $region15: #{encoder_forward.1} parent=1 // pred_check_branch
      %30 = sbr.rel (0) target = $region17
    $region16: #{encoder_forward.1} parent=1 // pred_region
      _
    $region17: #{encoder_forward.1} parent=1 // pred_fallthru
      _
    // Predicated region
    $region18: #{encoder_forward.1} parent=1 // pred_check
      _
    $region19: #{encoder_forward.1} parent=1 // pred_check_branch
      %32 = sbr.rel (0) target = $region21
    $region20: #{encoder_forward.1} parent=1 // pred_region
      _
    $region21: #{encoder_forward.1} parent=1 // pred_fallthru
      _
    // Predicated region
    $region22: #{encoder_forward.1} parent=1 // pred_check
      _
    $region23: #{encoder_forward.1} parent=1 // pred_check_branch
      %34 = sbr.rel (0) target = $region25
    $region24: #{encoder_forward.1} parent=1 // pred_region
      %36 = dma.done [#allocation4], 1920
    $region25: #{encoder_forward.1} parent=1 // pred_fallthru
      _
    %v37 = vld [vmem:[%s4] sm:$0xff]
    %v38 = vld [vmem:[%s4 + $0x8] sm:$0xff]
    %v39 = vld [vmem:[%s3] sm:$0xff]
    %v40 = vld [vmem:[%s3 + $0x8] sm:$0xff]
    %v41 = vld [vmem:[%s3 + $0x10] sm:$0xff]
    %v42 = vld [vmem:[%s3 + $0x18] sm:$0xff]
    %v43 = vld [vmem:[%s0] sm:$0xff]
    %v44 = vld [vmem:[%s0 + $0x8] sm:$0xff]
    %v45 = vld [vmem:[%s0 + $0x10] sm:$0xff]
    %v46 = vld [vmem:[%s0 + $0x18] sm:$0xff]
    %v47 = vperm.slane %v37, 3
    %vm48 = vcmask 23552
    %v50 = vsel %vm48, %v43, 0
    %v53 = vsel %vm48, %v44, 0
    %v56 = vsel %vm48, %v45, 0
    %v59 = vsel %vm48, %v46, 0
    %vm61 = vcmask 1042432
    %v63 = vsel %vm61, %v37, 0
    %65 = vmatpush.msra.mxu0 0.0
    %66 = vmatpush.msra.mxu0 0.0
    %67 = vmatpush.msra.mxu0 0.0
    %68 = vmatpush.msra.mxu0 0.0
    %69 = vmatpush.msra.mxu0 0.0
    %70 = vmatpush.msra.mxu0 0.0
    %71 = vmatpush.msra.mxu0 0.0
    %72 = vmatpush.msra.mxu0 0.0
    %73 = vmatpush.msra.mxu0 0.0
    %74 = vmatpush.msra.mxu0 0.0
    %75 = vmatpush.msra.mxu0 0.0
    %76 = vmatpush.msra.mxu0 0.0
    %77 = vmatpush.msra.mxu0 0.0
    %78 = vmatpush.msra.mxu0 0.0
    %79 = vmatpush.msra.mxu0 0.0
    %80 = vmatpush.msra.mxu0 %v63
    %81 = vmatmul.f32.gmra.mxu0 %v50
    %v82 = vpop.f32.mrf.mxu0
    %v83 = vadd.f32 %v47, %v82
    %84 = vmatmul.f32.gmra.mxu0 %v53
    %v85 = vpop.f32.mrf.mxu0
    %v86 = vadd.f32 %v47, %v85
    %87 = vmatmul.f32.gmra.mxu0 %v56
    %v88 = vpop.f32.mrf.mxu0
    %v89 = vadd.f32 %v47, %v88
    %90 = vmatmul.f32.gmra.mxu0 %v59
    %v91 = vpop.f32.mrf.mxu0
    %v92 = vadd.f32 %v47, %v91
    %93 = vdwg.mxu0
    %v94 = vld [vmem:[#allocation3] sm:$0xff]
    %v95 = vld [vmem:[#allocation3 + $0x8] sm:$0xff]
    %v96 = vld [vmem:[#allocation3 + $0x10] sm:$0xff]
    %v97 = vld [vmem:[#allocation3 + $0x18] sm:$0xff]
    %v98 = vld [vmem:[#allocation3 + $0x20] sm:$0xff]
    %v99 = vld [vmem:[#allocation3 + $0x28] sm:$0xff]
    %v100 = vld [vmem:[#allocation3 + $0x30] sm:$0xff]
    %v101 = vld [vmem:[#allocation3 + $0x38] sm:$0xff]
    %v102 = vld [vmem:[#allocation3 + $0x40] sm:$0xff]
    %v103 = vld [vmem:[#allocation3 + $0x48] sm:$0xff]
    %v104 = vld [vmem:[#allocation3 + $0x50] sm:$0xff]
    %v105 = vld [vmem:[#allocation3 + $0x58] sm:$0xff]
    %vm106 = vcmask 64512
    %v108 = vsel %vm106, %v83, 0
    %v111 = vsel %vm106, %v86, 0
    %v114 = vsel %vm106, %v89, 0
    %v117 = vsel %vm106, %v92, 0
    %119 = vmatpush.msra.mxu0 0.0
    %120 = vmatpush.msra.mxu0 0.0
    %121 = vmatpush.msra.mxu0 0.0
    %122 = vmatpush.msra.mxu0 0.0
    %123 = vmatpush.msra.mxu0 0.0
    %124 = vmatpush.msra.mxu0 0.0
    %125 = vmatpush.msra.mxu0 0.0
    %126 = vmatpush.msra.mxu0 0.0
    %127 = vmatpush.msra.mxu0 0.0
    %128 = vmatpush.msra.mxu0 0.0
    %129 = vmatpush.msra.mxu0 0.0
    %130 = vmatpush.msra.mxu0 0.0
    %131 = vmatpush.msra.mxu0 0.0
    %132 = vmatpush.msra.mxu0 0.0
    %133 = vmatpush.msra.mxu0 0.0
    %134 = vmatpush.msra.mxu0 %v39
    %135 = vmatmul.f32.gmra.mxu0 %v108
    %v136 = vpop.f32.mrf.mxu0
    %v137 = vadd.f32 0.0, %v136
    %138 = vmatmul.f32.gmra.mxu0 %v111
    %v139 = vpop.f32.mrf.mxu0
    %v140 = vadd.f32 0.0, %v139
    %141 = vmatmul.f32.gmra.mxu0 %v114
    %v142 = vpop.f32.mrf.mxu0
    %v143 = vadd.f32 0.0, %v142
    %144 = vmatmul.f32.gmra.mxu0 %v117
    %v145 = vpop.f32.mrf.mxu0
    %v146 = vadd.f32 0.0, %v145
    %147 = vdwg.mxu0
    %148 = vst.msk [vmem:[#allocation2] sm:$0xff] %vm106, %v137
    %149 = vst.msk [vmem:[#allocation2 + $0x8] sm:$0xff] %vm106, %v140
    %150 = vst.msk [vmem:[#allocation2 + $0x10] sm:$0xff] %vm106, %v143
    %151 = vst.msk [vmem:[#allocation2 + $0x18] sm:$0xff] %vm106, %v146
    %156 = vrot.lane.b32.xlu0 %v137, 120
    %v157 = vpop.permute.xlu0 %156
    %158 = vrot.lane.b32.xlu0 %v140, 120
    %v159 = vpop.permute.xlu0 %158
    %160 = vrot.lane.b32.xlu0 %v143, 120
    %v161 = vpop.permute.xlu0 %160
    %162 = vrot.lane.b32.xlu0 %v146, 120
    %v163 = vpop.permute.xlu0 %162
    %168 = vst.msk [vmem:[#allocation2 + $0x20] sm:$0xff] %vm106, %v157
    %169 = vst.msk [vmem:[#allocation2 + $0x28] sm:$0xff] %vm106, %v159
    %170 = vst.msk [vmem:[#allocation2 + $0x30] sm:$0xff] %vm106, %v161
    %171 = vst.msk [vmem:[#allocation2 + $0x38] sm:$0xff] %vm106, %v163
    %172 = vrot.lane.b32.xlu0 %v137, 112
    %v173 = vpop.permute.xlu0 %172
    %174 = vrot.lane.b32.xlu0 %v140, 112
    %v175 = vpop.permute.xlu0 %174
    %176 = vrot.lane.b32.xlu0 %v143, 112
    %v177 = vpop.permute.xlu0 %176
    %178 = vrot.lane.b32.xlu0 %v146, 112
    %v179 = vpop.permute.xlu0 %178
    %184 = vst.msk [vmem:[#allocation2 + $0x40] sm:$0xff] %vm106, %v173
    %185 = vst.msk [vmem:[#allocation2 + $0x48] sm:$0xff] %vm106, %v175
    %186 = vst.msk [vmem:[#allocation2 + $0x50] sm:$0xff] %vm106, %v177
    %187 = vst.msk [vmem:[#allocation2 + $0x58] sm:$0xff] %vm106, %v179
    %188 = vrot.lane.b32.xlu0 %v137, 104
    %v189 = vpop.permute.xlu0 %188
    %190 = vrot.lane.b32.xlu0 %v140, 104
    %v191 = vpop.permute.xlu0 %190
    %192 = vrot.lane.b32.xlu0 %v143, 104
    %v193 = vpop.permute.xlu0 %192
    %194 = vrot.lane.b32.xlu0 %v146, 104
    %v195 = vpop.permute.xlu0 %194
    %200 = vst.msk [vmem:[#allocation2 + $0x60] sm:$0xff] %vm106, %v189
    %201 = vst.msk [vmem:[#allocation2 + $0x68] sm:$0xff] %vm106, %v191
    %202 = vst.msk [vmem:[#allocation2 + $0x70] sm:$0xff] %vm106, %v193
    %203 = vst.msk [vmem:[#allocation2 + $0x78] sm:$0xff] %vm106, %v195
    %204 = vrot.lane.b32.xlu0 %v137, 96
    %v205 = vpop.permute.xlu0 %204
    %206 = vrot.lane.b32.xlu0 %v140, 96
    %v207 = vpop.permute.xlu0 %206
    %208 = vrot.lane.b32.xlu0 %v143, 96
    %v209 = vpop.permute.xlu0 %208
    %210 = vrot.lane.b32.xlu0 %v146, 96
    %v211 = vpop.permute.xlu0 %210
    %216 = vst.msk [vmem:[#allocation2 + $0x80] sm:$0xff] %vm106, %v205
    %217 = vst.msk [vmem:[#allocation2 + $0x88] sm:$0xff] %vm106, %v207
    %218 = vst.msk [vmem:[#allocation2 + $0x90] sm:$0xff] %vm106, %v209
    %219 = vst.msk [vmem:[#allocation2 + $0x98] sm:$0xff] %vm106, %v211
    %220 = vrot.lane.b32.xlu0 %v137, 88
    %v221 = vpop.permute.xlu0 %220
    %222 = vrot.lane.b32.xlu0 %v140, 88
    %v223 = vpop.permute.xlu0 %222
    %224 = vrot.lane.b32.xlu0 %v143, 88
    %v225 = vpop.permute.xlu0 %224
    %226 = vrot.lane.b32.xlu0 %v146, 88
    %v227 = vpop.permute.xlu0 %226
    %232 = vst.msk [vmem:[#allocation2 + $0xa0] sm:$0xff] %vm106, %v221
    %233 = vst.msk [vmem:[#allocation2 + $0xa8] sm:$0xff] %vm106, %v223
    %234 = vst.msk [vmem:[#allocation2 + $0xb0] sm:$0xff] %vm106, %v225
    %235 = vst.msk [vmem:[#allocation2 + $0xb8] sm:$0xff] %vm106, %v227
    %236 = vrot.lane.b32.xlu0 %v137, 80
    %v237 = vpop.permute.xlu0 %236
    %238 = vrot.lane.b32.xlu0 %v140, 80
    %v239 = vpop.permute.xlu0 %238
    %240 = vrot.lane.b32.xlu0 %v143, 80
    %v241 = vpop.permute.xlu0 %240
    %242 = vrot.lane.b32.xlu0 %v146, 80
    %v243 = vpop.permute.xlu0 %242
    %248 = vst.msk [vmem:[#allocation2 + $0xc0] sm:$0xff] %vm106, %v237
    %249 = vst.msk [vmem:[#allocation2 + $0xc8] sm:$0xff] %vm106, %v239
    %250 = vst.msk [vmem:[#allocation2 + $0xd0] sm:$0xff] %vm106, %v241
    %251 = vst.msk [vmem:[#allocation2 + $0xd8] sm:$0xff] %vm106, %v243
    %252 = vrot.lane.b32.xlu0 %v137, 72
    %v253 = vpop.permute.xlu0 %252
    %254 = vrot.lane.b32.xlu0 %v140, 72
    %v255 = vpop.permute.xlu0 %254
    %256 = vrot.lane.b32.xlu0 %v143, 72
    %v257 = vpop.permute.xlu0 %256
    %258 = vrot.lane.b32.xlu0 %v146, 72
    %v259 = vpop.permute.xlu0 %258
    %264 = vst.msk [vmem:[#allocation2 + $0xe0] sm:$0xff] %vm106, %v253
    %265 = vst.msk [vmem:[#allocation2 + $0xe8] sm:$0xff] %vm106, %v255
    %266 = vst.msk [vmem:[#allocation2 + $0xf0] sm:$0xff] %vm106, %v257
    %267 = vst.msk [vmem:[#allocation2 + $0xf8] sm:$0xff] %vm106, %v259
    %268 = vrot.lane.b32.xlu0 %v137, 64
    %v269 = vpop.permute.xlu0 %268
    %270 = vrot.lane.b32.xlu0 %v140, 64
    %v271 = vpop.permute.xlu0 %270
    %272 = vrot.lane.b32.xlu0 %v143, 64
    %v273 = vpop.permute.xlu0 %272
    %274 = vrot.lane.b32.xlu0 %v146, 64
    %v275 = vpop.permute.xlu0 %274
    %280 = vst.msk [vmem:[#allocation2 + $0x100] sm:$0xff] %vm106, %v269
    %281 = vst.msk [vmem:[#allocation2 + $0x108] sm:$0xff] %vm106, %v271
    %282 = vst.msk [vmem:[#allocation2 + $0x110] sm:$0xff] %vm106, %v273
    %283 = vst.msk [vmem:[#allocation2 + $0x118] sm:$0xff] %vm106, %v275
    %v284 = vld [vmem:[#allocation2] sm:$0xff]
    %v285 = vld [vmem:[#allocation2 + $0x8] sm:$0xff]
    %v286 = vld [vmem:[#allocation2 + $0x10] sm:$0xff]
    %v287 = vld [vmem:[#allocation2 + $0x18] sm:$0xff]
    %v288 = vld [vmem:[#allocation2 + $0x20] sm:$0xff]
    %v289 = vld [vmem:[#allocation2 + $0x28] sm:$0xff]
    %v290 = vld [vmem:[#allocation2 + $0x30] sm:$0xff]
    %v291 = vld [vmem:[#allocation2 + $0x38] sm:$0xff]
    %v292 = vld [vmem:[#allocation2 + $0x40] sm:$0xff]
    %v293 = vld [vmem:[#allocation2 + $0x48] sm:$0xff]
    %v294 = vld [vmem:[#allocation2 + $0x50] sm:$0xff]
    %v295 = vld [vmem:[#allocation2 + $0x58] sm:$0xff]
    %v296 = vld [vmem:[#allocation2 + $0x60] sm:$0xff]
    %v297 = vld [vmem:[#allocation2 + $0x68] sm:$0xff]
    %v298 = vld [vmem:[#allocation2 + $0x70] sm:$0xff]
    %v299 = vld [vmem:[#allocation2 + $0x78] sm:$0xff]
    %v300 = vld [vmem:[#allocation2 + $0x80] sm:$0xff]
    %v301 = vld [vmem:[#allocation2 + $0x88] sm:$0xff]
    %v302 = vld [vmem:[#allocation2 + $0x90] sm:$0xff]
    %v303 = vld [vmem:[#allocation2 + $0x98] sm:$0xff]
    %v304 = vld [vmem:[#allocation2 + $0xa0] sm:$0xff]
    %v305 = vld [vmem:[#allocation2 + $0xa8] sm:$0xff]
    %v306 = vld [vmem:[#allocation2 + $0xb0] sm:$0xff]
    %v307 = vld [vmem:[#allocation2 + $0xb8] sm:$0xff]
    %v308 = vld [vmem:[#allocation2 + $0xc0] sm:$0xff]
    %v309 = vld [vmem:[#allocation2 + $0xc8] sm:$0xff]
    %v310 = vld [vmem:[#allocation2 + $0xd0] sm:$0xff]
    %v311 = vld [vmem:[#allocation2 + $0xd8] sm:$0xff]
    %v312 = vld [vmem:[#allocation2 + $0xe0] sm:$0xff]
    %v313 = vld [vmem:[#allocation2 + $0xe8] sm:$0xff]
    %v314 = vld [vmem:[#allocation2 + $0xf0] sm:$0xff]
    %v315 = vld [vmem:[#allocation2 + $0xf8] sm:$0xff]
    %v316 = vld [vmem:[#allocation2 + $0x100] sm:$0xff]
    %v317 = vld [vmem:[#allocation2 + $0x108] sm:$0xff]
    %v318 = vld [vmem:[#allocation2 + $0x110] sm:$0xff]
    %v319 = vld [vmem:[#allocation2 + $0x118] sm:$0xff]
    %v320 = vperm.slane %v37, 4
    %vm321 = vcmask 261120
    %v323 = vsel %vm321, %v96, 0
    %v326 = vsel %vm321, %v99, 0
    %v329 = vsel %vm321, %v102, 0
    %v332 = vsel %vm321, %v105, 0
    %334 = vmatpush.msra.mxu0 %v299
    %335 = vmatpush.msra.mxu0 %v298
    %336 = vmatpush.msra.mxu0 %v297
    %337 = vmatpush.msra.mxu0 %v296
    %338 = vmatpush.msra.mxu0 %v295
    %339 = vmatpush.msra.mxu0 %v294
    %340 = vmatpush.msra.mxu0 %v293
    %341 = vmatpush.msra.mxu0 %v292
    %342 = vmatpush.msra.mxu0 %v291
    %343 = vmatpush.msra.mxu0 %v290
    %344 = vmatpush.msra.mxu0 %v289
    %345 = vmatpush.msra.mxu0 %v288
    %346 = vmatpush.msra.mxu0 %v287
    %347 = vmatpush.msra.mxu0 %v286
    %348 = vmatpush.msra.mxu0 %v285
    %349 = vmatpush.msra.mxu0 %v284
    %350 = vmatmul.f32.gmra.mxu0 %v94
    %v351 = vpop.f32.mrf.mxu0
    %v352 = vadd.f32 %v320, %v351
    %353 = vmatmul.f32.gmra.mxu0 %v97
    %v354 = vpop.f32.mrf.mxu0
    %v355 = vadd.f32 %v320, %v354
    %356 = vmatmul.f32.gmra.mxu0 %v100
    %v357 = vpop.f32.mrf.mxu0
    %v358 = vadd.f32 %v320, %v357
    %359 = vmatmul.f32.gmra.mxu0 %v103
    %v360 = vpop.f32.mrf.mxu0
    %v361 = vadd.f32 %v320, %v360
    %362 = vdwg.mxu0
    %363 = vmatpush.msra.mxu0 %v315
    %364 = vmatpush.msra.mxu0 %v314
    %365 = vmatpush.msra.mxu0 %v313
    %366 = vmatpush.msra.mxu0 %v312
    %367 = vmatpush.msra.mxu0 %v311
    %368 = vmatpush.msra.mxu0 %v310
    %369 = vmatpush.msra.mxu0 %v309
    %370 = vmatpush.msra.mxu0 %v308
    %371 = vmatpush.msra.mxu0 %v307
    %372 = vmatpush.msra.mxu0 %v306
    %373 = vmatpush.msra.mxu0 %v305
    %374 = vmatpush.msra.mxu0 %v304
    %375 = vmatpush.msra.mxu0 %v303
    %376 = vmatpush.msra.mxu0 %v302
    %377 = vmatpush.msra.mxu0 %v301
    %378 = vmatpush.msra.mxu0 %v300
    %379 = vmatmul.f32.gmra.mxu0 %v95
    %v380 = vpop.f32.mrf.mxu0
    %v381 = vadd.f32 %v352, %v380
    %382 = vmatmul.f32.gmra.mxu0 %v98
    %v383 = vpop.f32.mrf.mxu0
    %v384 = vadd.f32 %v355, %v383
    %385 = vmatmul.f32.gmra.mxu0 %v101
    %v386 = vpop.f32.mrf.mxu0
    %v387 = vadd.f32 %v358, %v386
    %388 = vmatmul.f32.gmra.mxu0 %v104
    %v389 = vpop.f32.mrf.mxu0
    %v390 = vadd.f32 %v361, %v389
    %391 = vdwg.mxu0
    %392 = vmatpush.msra.mxu0 0.0
    %393 = vmatpush.msra.mxu0 0.0
    %394 = vmatpush.msra.mxu0 0.0
    %395 = vmatpush.msra.mxu0 0.0
    %396 = vmatpush.msra.mxu0 0.0
    %397 = vmatpush.msra.mxu0 0.0
    %398 = vmatpush.msra.mxu0 0.0
    %399 = vmatpush.msra.mxu0 0.0
    %400 = vmatpush.msra.mxu0 0.0
    %401 = vmatpush.msra.mxu0 0.0
    %402 = vmatpush.msra.mxu0 0.0
    %403 = vmatpush.msra.mxu0 0.0
    %404 = vmatpush.msra.mxu0 %v319
    %405 = vmatpush.msra.mxu0 %v318
    %406 = vmatpush.msra.mxu0 %v317
    %407 = vmatpush.msra.mxu0 %v316
    %408 = vmatmul.f32.gmra.mxu0 %v323
    %v409 = vpop.f32.mrf.mxu0
    %v410 = vadd.f32 %v381, %v409
    %411 = vmatmul.f32.gmra.mxu0 %v326
    %v412 = vpop.f32.mrf.mxu0
    %v413 = vadd.f32 %v384, %v412
    %414 = vmatmul.f32.gmra.mxu0 %v329
    %v415 = vpop.f32.mrf.mxu0
    %v416 = vadd.f32 %v387, %v415
    %417 = vmatmul.f32.gmra.mxu0 %v332
    %v418 = vpop.f32.mrf.mxu0
    %v419 = vadd.f32 %v390, %v418
    %420 = vdwg.mxu0
    %vm421 = vcmp.gt.f32.partialorder %v410, 0.0
    %vm422 = vcmp.gt.f32.partialorder %v413, 0.0
    %vm423 = vcmp.gt.f32.partialorder %v416, 0.0
    %vm424 = vcmp.gt.f32.partialorder %v419, 0.0
    %v425 = vmul.f32 %v410, 1.442695
    %v426 = vpow.pop %v425
    %v427 = vmul.f32 %v413, 1.442695
    %v428 = vpow.pop %v427
    %v429 = vmul.f32 %v416, 1.442695
    %v430 = vpow.pop %v429
    %v431 = vmul.f32 %v419, 1.442695
    %v432 = vpow.pop %v431
    %v433 = vsub.f32 %v426, 1.0
    %v434 = vsub.f32 %v428, 1.0
    %v435 = vsub.f32 %v430, 1.0
    %v436 = vsub.f32 %v432, 1.0
    %v437 = vsel %vm421, %v410, %v433
    %v438 = vsel %vm422, %v413, %v434
    %v439 = vsel %vm423, %v416, %v435
    %v440 = vsel %vm424, %v419, %v436
    %v441 = vsel %vm106, %v437, 0.0
    %v442 = vsel %vm106, %v438, 0.0
    %v443 = vadd.f32 %v441, %v442
    %v444 = vsel %vm106, %v439, 0.0
    %v445 = vadd.f32 %v443, %v444
    %v446 = vsel %vm106, %v440, 0.0
    %v447 = vadd.f32 %v445, %v446
    %v448 = vrot.slane %v447, 4
    %v449 = vadd.f32 %v447, %v448
    %v450 = vrot.slane %v449, 2
    %v451 = vadd.f32 %v449, %v450
    %v452 = vrot.slane %v451, 1
    %v453 = vadd.f32 %v451, %v452
    %v454 = vmul.f32 %v453, 0.03125
    %v455 = vsub.f32 %v437, %v454
    %v456 = vsub.f32 %v438, %v454
    %v457 = vsub.f32 %v439, %v454
    %v458 = vsub.f32 %v440, %v454
    %v459 = vmul.f32 %v455, %v455
    %v460 = vmul.f32 %v456, %v456
    %v461 = vmul.f32 %v457, %v457
    %v462 = vmul.f32 %v458, %v458
    %v463 = vsel %vm106, %v459, 0.0
    %v464 = vsel %vm106, %v460, 0.0
    %v465 = vadd.f32 %v463, %v464
    %v466 = vsel %vm106, %v461, 0.0
    %v467 = vadd.f32 %v465, %v466
    %v468 = vsel %vm106, %v462, 0.0
    %v469 = vadd.f32 %v467, %v468
    %v470 = vrot.slane %v469, 4
    %v471 = vadd.f32 %v469, %v470
    %v472 = vrot.slane %v471, 2
    %v473 = vadd.f32 %v471, %v472
    %v474 = vrot.slane %v473, 1
    %v475 = vadd.f32 %v473, %v474
    %v476 = vmul.f32 %v475, 0.03125
    %v477 = vadd.f32 %v476, 1e-05
    %v478 = vrsqrt.pop %v477
    %v479 = vmul.f32 %v478, %v477
    %v480 = vmul.f32 %v479, %v478
    %v481 = vmul.f32 0.5, %v480
    %v482 = vsub.f32 1.5, %v481
    %v483 = vmul.f32 %v478, %v482
    %vm484 = vweird.f32 %v477
    %vm485 = vweird.f32 %v478
    %vm486 = vmor %vm484, %vm485
    %v487 = vsel %vm486, %v478, %v483
    %v488 = vmul.f32 %v487, %v37
    %v489 = vperm.slane %v488, 5
    %v490 = vmul.f32 %v455, %v489
    %v491 = vmul.f32 %v456, %v489
    %v492 = vmul.f32 %v457, %v489
    %v493 = vmul.f32 %v458, %v489
    %v494 = vperm.slane %v37, 6
    %v495 = vadd.f32 %v490, %v494
    %v496 = vadd.f32 %v491, %v494
    %v497 = vadd.f32 %v492, %v494
    %v498 = vadd.f32 %v493, %v494
    %v499 = vld [vmem:[#allocation3 + $0x60] sm:$0xff]
    %v500 = vld [vmem:[#allocation3 + $0x68] sm:$0xff]
    %v501 = vld [vmem:[#allocation3 + $0x70] sm:$0xff]
    %v503 = vsel %vm106, %v495, 0
    %v506 = vsel %vm106, %v496, 0
    %v509 = vsel %vm106, %v497, 0
    %v512 = vsel %vm106, %v498, 0
    %514 = vmatpush.msra.mxu0 0.0
    %515 = vmatpush.msra.mxu0 0.0
    %516 = vmatpush.msra.mxu0 0.0
    %517 = vmatpush.msra.mxu0 0.0
    %518 = vmatpush.msra.mxu0 0.0
    %519 = vmatpush.msra.mxu0 0.0
    %520 = vmatpush.msra.mxu0 0.0
    %521 = vmatpush.msra.mxu0 0.0
    %522 = vmatpush.msra.mxu0 0.0
    %523 = vmatpush.msra.mxu0 0.0
    %524 = vmatpush.msra.mxu0 0.0
    %525 = vmatpush.msra.mxu0 0.0
    %526 = vmatpush.msra.mxu0 0.0
    %527 = vmatpush.msra.mxu0 0.0
    %528 = vmatpush.msra.mxu0 0.0
    %529 = vmatpush.msra.mxu0 %v40
    %530 = vmatmul.f32.gmra.mxu0 %v503
    %v531 = vpop.f32.mrf.mxu0
    %v532 = vadd.f32 0.0, %v531
    %533 = vmatmul.f32.gmra.mxu0 %v506
    %v534 = vpop.f32.mrf.mxu0
    %v535 = vadd.f32 0.0, %v534
    %536 = vmatmul.f32.gmra.mxu0 %v509
    %v537 = vpop.f32.mrf.mxu0
    %v538 = vadd.f32 0.0, %v537
    %539 = vmatmul.f32.gmra.mxu0 %v512
    %v540 = vpop.f32.mrf.mxu0
    %v541 = vadd.f32 0.0, %v540
    %542 = vdwg.mxu0
    %543 = vst.msk [vmem:[#allocation2] sm:$0xff] %vm106, %v532
    %544 = vst.msk [vmem:[#allocation2 + $0x8] sm:$0xff] %vm106, %v535
    %545 = vst.msk [vmem:[#allocation2 + $0x10] sm:$0xff] %vm106, %v538
    %546 = vst.msk [vmem:[#allocation2 + $0x18] sm:$0xff] %vm106, %v541
    %551 = vrot.lane.b32.xlu0 %v532, 120
    %v552 = vpop.permute.xlu0 %551
    %553 = vrot.lane.b32.xlu0 %v535, 120
    %v554 = vpop.permute.xlu0 %553
    %555 = vrot.lane.b32.xlu0 %v538, 120
    %v556 = vpop.permute.xlu0 %555
    %557 = vrot.lane.b32.xlu0 %v541, 120
    %v558 = vpop.permute.xlu0 %557
    %563 = vst.msk [vmem:[#allocation2 + $0x20] sm:$0xff] %vm106, %v552
    %564 = vst.msk [vmem:[#allocation2 + $0x28] sm:$0xff] %vm106, %v554
    %565 = vst.msk [vmem:[#allocation2 + $0x30] sm:$0xff] %vm106, %v556
    %566 = vst.msk [vmem:[#allocation2 + $0x38] sm:$0xff] %vm106, %v558
    %567 = vrot.lane.b32.xlu0 %v532, 112
    %v568 = vpop.permute.xlu0 %567
    %569 = vrot.lane.b32.xlu0 %v535, 112
    %v570 = vpop.permute.xlu0 %569
    %571 = vrot.lane.b32.xlu0 %v538, 112
    %v572 = vpop.permute.xlu0 %571
    %573 = vrot.lane.b32.xlu0 %v541, 112
    %v574 = vpop.permute.xlu0 %573
    %579 = vst.msk [vmem:[#allocation2 + $0x40] sm:$0xff] %vm106, %v568
    %580 = vst.msk [vmem:[#allocation2 + $0x48] sm:$0xff] %vm106, %v570
    %581 = vst.msk [vmem:[#allocation2 + $0x50] sm:$0xff] %vm106, %v572
    %582 = vst.msk [vmem:[#allocation2 + $0x58] sm:$0xff] %vm106, %v574
    %583 = vrot.lane.b32.xlu0 %v532, 104
    %v584 = vpop.permute.xlu0 %583
    %585 = vrot.lane.b32.xlu0 %v535, 104
    %v586 = vpop.permute.xlu0 %585
    %587 = vrot.lane.b32.xlu0 %v538, 104
    %v588 = vpop.permute.xlu0 %587
    %589 = vrot.lane.b32.xlu0 %v541, 104
    %v590 = vpop.permute.xlu0 %589
    %595 = vst.msk [vmem:[#allocation2 + $0x60] sm:$0xff] %vm106, %v584
    %596 = vst.msk [vmem:[#allocation2 + $0x68] sm:$0xff] %vm106, %v586
    %597 = vst.msk [vmem:[#allocation2 + $0x70] sm:$0xff] %vm106, %v588
    %598 = vst.msk [vmem:[#allocation2 + $0x78] sm:$0xff] %vm106, %v590
    %599 = vrot.lane.b32.xlu0 %v532, 96
    %v600 = vpop.permute.xlu0 %599
    %601 = vrot.lane.b32.xlu0 %v535, 96
    %v602 = vpop.permute.xlu0 %601
    %603 = vrot.lane.b32.xlu0 %v538, 96
    %v604 = vpop.permute.xlu0 %603
    %605 = vrot.lane.b32.xlu0 %v541, 96
    %v606 = vpop.permute.xlu0 %605
    %611 = vst.msk [vmem:[#allocation2 + $0x80] sm:$0xff] %vm106, %v600
    %612 = vst.msk [vmem:[#allocation2 + $0x88] sm:$0xff] %vm106, %v602
    %613 = vst.msk [vmem:[#allocation2 + $0x90] sm:$0xff] %vm106, %v604
    %614 = vst.msk [vmem:[#allocation2 + $0x98] sm:$0xff] %vm106, %v606
    %615 = vrot.lane.b32.xlu0 %v532, 88
    %v616 = vpop.permute.xlu0 %615
    %617 = vrot.lane.b32.xlu0 %v535, 88
    %v618 = vpop.permute.xlu0 %617
    %619 = vrot.lane.b32.xlu0 %v538, 88
    %v620 = vpop.permute.xlu0 %619
    %621 = vrot.lane.b32.xlu0 %v541, 88
    %v622 = vpop.permute.xlu0 %621
    %627 = vst.msk [vmem:[#allocation2 + $0xa0] sm:$0xff] %vm106, %v616
    %628 = vst.msk [vmem:[#allocation2 + $0xa8] sm:$0xff] %vm106, %v618
    %629 = vst.msk [vmem:[#allocation2 + $0xb0] sm:$0xff] %vm106, %v620
    %630 = vst.msk [vmem:[#allocation2 + $0xb8] sm:$0xff] %vm106, %v622
    %631 = vrot.lane.b32.xlu0 %v532, 80
    %v632 = vpop.permute.xlu0 %631
    %633 = vrot.lane.b32.xlu0 %v535, 80
    %v634 = vpop.permute.xlu0 %633
    %635 = vrot.lane.b32.xlu0 %v538, 80
    %v636 = vpop.permute.xlu0 %635
    %637 = vrot.lane.b32.xlu0 %v541, 80
    %v638 = vpop.permute.xlu0 %637
    %643 = vst.msk [vmem:[#allocation2 + $0xc0] sm:$0xff] %vm106, %v632
    %644 = vst.msk [vmem:[#allocation2 + $0xc8] sm:$0xff] %vm106, %v634
    %645 = vst.msk [vmem:[#allocation2 + $0xd0] sm:$0xff] %vm106, %v636
    %646 = vst.msk [vmem:[#allocation2 + $0xd8] sm:$0xff] %vm106, %v638
    %647 = vrot.lane.b32.xlu0 %v532, 72
    %v648 = vpop.permute.xlu0 %647
    %649 = vrot.lane.b32.xlu0 %v535, 72
    %v650 = vpop.permute.xlu0 %649
    %651 = vrot.lane.b32.xlu0 %v538, 72
    %v652 = vpop.permute.xlu0 %651
    %653 = vrot.lane.b32.xlu0 %v541, 72
    %v654 = vpop.permute.xlu0 %653
    %659 = vst.msk [vmem:[#allocation2 + $0xe0] sm:$0xff] %vm106, %v648
    %660 = vst.msk [vmem:[#allocation2 + $0xe8] sm:$0xff] %vm106, %v650
    %661 = vst.msk [vmem:[#allocation2 + $0xf0] sm:$0xff] %vm106, %v652
    %662 = vst.msk [vmem:[#allocation2 + $0xf8] sm:$0xff] %vm106, %v654
    %663 = vrot.lane.b32.xlu0 %v532, 64
    %v664 = vpop.permute.xlu0 %663
    %665 = vrot.lane.b32.xlu0 %v535, 64
    %v666 = vpop.permute.xlu0 %665
    %667 = vrot.lane.b32.xlu0 %v538, 64
    %v668 = vpop.permute.xlu0 %667
    %669 = vrot.lane.b32.xlu0 %v541, 64
    %v670 = vpop.permute.xlu0 %669
    %675 = vst.msk [vmem:[#allocation2 + $0x100] sm:$0xff] %vm106, %v664
    %676 = vst.msk [vmem:[#allocation2 + $0x108] sm:$0xff] %vm106, %v666
    %677 = vst.msk [vmem:[#allocation2 + $0x110] sm:$0xff] %vm106, %v668
    %678 = vst.msk [vmem:[#allocation2 + $0x118] sm:$0xff] %vm106, %v670
    %v679 = vld [vmem:[#allocation2] sm:$0xff]
    %v680 = vld [vmem:[#allocation2 + $0x8] sm:$0xff]
    %v681 = vld [vmem:[#allocation2 + $0x10] sm:$0xff]
    %v682 = vld [vmem:[#allocation2 + $0x18] sm:$0xff]
    %v683 = vld [vmem:[#allocation2 + $0x20] sm:$0xff]
    %v684 = vld [vmem:[#allocation2 + $0x28] sm:$0xff]
    %v685 = vld [vmem:[#allocation2 + $0x30] sm:$0xff]
    %v686 = vld [vmem:[#allocation2 + $0x38] sm:$0xff]
    %v687 = vld [vmem:[#allocation2 + $0x40] sm:$0xff]
    %v688 = vld [vmem:[#allocation2 + $0x48] sm:$0xff]
    %v689 = vld [vmem:[#allocation2 + $0x50] sm:$0xff]
    %v690 = vld [vmem:[#allocation2 + $0x58] sm:$0xff]
    %v691 = vld [vmem:[#allocation2 + $0x60] sm:$0xff]
    %v692 = vld [vmem:[#allocation2 + $0x68] sm:$0xff]
    %v693 = vld [vmem:[#allocation2 + $0x70] sm:$0xff]
    %v694 = vld [vmem:[#allocation2 + $0x78] sm:$0xff]
    %v695 = vld [vmem:[#allocation2 + $0x80] sm:$0xff]
    %v696 = vld [vmem:[#allocation2 + $0x88] sm:$0xff]
    %v697 = vld [vmem:[#allocation2 + $0x90] sm:$0xff]
    %v698 = vld [vmem:[#allocation2 + $0x98] sm:$0xff]
    %v699 = vld [vmem:[#allocation2 + $0xa0] sm:$0xff]
    %v700 = vld [vmem:[#allocation2 + $0xa8] sm:$0xff]
    %v701 = vld [vmem:[#allocation2 + $0xb0] sm:$0xff]
    %v702 = vld [vmem:[#allocation2 + $0xb8] sm:$0xff]
    %v703 = vld [vmem:[#allocation2 + $0xc0] sm:$0xff]
    %v704 = vld [vmem:[#allocation2 + $0xc8] sm:$0xff]
    %v705 = vld [vmem:[#allocation2 + $0xd0] sm:$0xff]
    %v706 = vld [vmem:[#allocation2 + $0xd8] sm:$0xff]
    %v707 = vld [vmem:[#allocation2 + $0xe0] sm:$0xff]
    %v708 = vld [vmem:[#allocation2 + $0xe8] sm:$0xff]
    %v709 = vld [vmem:[#allocation2 + $0xf0] sm:$0xff]
    %v710 = vld [vmem:[#allocation2 + $0xf8] sm:$0xff]
    %v711 = vld [vmem:[#allocation2 + $0x100] sm:$0xff]
    %v712 = vld [vmem:[#allocation2 + $0x108] sm:$0xff]
    %v713 = vld [vmem:[#allocation2 + $0x110] sm:$0xff]
    %v714 = vld [vmem:[#allocation2 + $0x118] sm:$0xff]
    %v715 = vperm.slane %v37, 7
    %v717 = vsel %vm321, %v501, 0
    %719 = vmatpush.msra.mxu0 %v694
    %720 = vmatpush.msra.mxu0 %v693
    %721 = vmatpush.msra.mxu0 %v692
    %722 = vmatpush.msra.mxu0 %v691
    %723 = vmatpush.msra.mxu0 %v690
    %724 = vmatpush.msra.mxu0 %v689
    %725 = vmatpush.msra.mxu0 %v688
    %726 = vmatpush.msra.mxu0 %v687
    %727 = vmatpush.msra.mxu0 %v686
    %728 = vmatpush.msra.mxu0 %v685
    %729 = vmatpush.msra.mxu0 %v684
    %730 = vmatpush.msra.mxu0 %v683
    %731 = vmatpush.msra.mxu0 %v682
    %732 = vmatpush.msra.mxu0 %v681
    %733 = vmatpush.msra.mxu0 %v680
    %734 = vmatpush.msra.mxu0 %v679
    %735 = vmatmul.f32.gmra.mxu0 %v499
    %v736 = vpop.f32.mrf.mxu0
    %v737 = vadd.f32 %v715, %v736
    %738 = vdwg.mxu0
    %739 = vmatpush.msra.mxu0 %v710
    %740 = vmatpush.msra.mxu0 %v709
    %741 = vmatpush.msra.mxu0 %v708
    %742 = vmatpush.msra.mxu0 %v707
    %743 = vmatpush.msra.mxu0 %v706
    %744 = vmatpush.msra.mxu0 %v705
    %745 = vmatpush.msra.mxu0 %v704
    %746 = vmatpush.msra.mxu0 %v703
    %747 = vmatpush.msra.mxu0 %v702
    %748 = vmatpush.msra.mxu0 %v701
    %749 = vmatpush.msra.mxu0 %v700
    %750 = vmatpush.msra.mxu0 %v699
    %751 = vmatpush.msra.mxu0 %v698
    %752 = vmatpush.msra.mxu0 %v697
    %753 = vmatpush.msra.mxu0 %v696
    %754 = vmatpush.msra.mxu0 %v695
    %755 = vmatmul.f32.gmra.mxu0 %v500
    %v756 = vpop.f32.mrf.mxu0
    %v757 = vadd.f32 %v737, %v756
    %758 = vdwg.mxu0
    %759 = vmatpush.msra.mxu0 0.0
    %760 = vmatpush.msra.mxu0 0.0
    %761 = vmatpush.msra.mxu0 0.0
    %762 = vmatpush.msra.mxu0 0.0
    %763 = vmatpush.msra.mxu0 0.0
    %764 = vmatpush.msra.mxu0 0.0
    %765 = vmatpush.msra.mxu0 0.0
    %766 = vmatpush.msra.mxu0 0.0
    %767 = vmatpush.msra.mxu0 0.0
    %768 = vmatpush.msra.mxu0 0.0
    %769 = vmatpush.msra.mxu0 0.0
    %770 = vmatpush.msra.mxu0 0.0
    %771 = vmatpush.msra.mxu0 %v714
    %772 = vmatpush.msra.mxu0 %v713
    %773 = vmatpush.msra.mxu0 %v712
    %774 = vmatpush.msra.mxu0 %v711
    %775 = vmatmul.f32.gmra.mxu0 %v717
    %v776 = vpop.f32.mrf.mxu0
    %v777 = vadd.f32 %v757, %v776
    %778 = vdwg.mxu0
    %vm779 = vcmp.gt.f32.partialorder %v777, 0.0
    %v780 = vmul.f32 %v777, 1.442695
    %v781 = vpow.pop %v780
    %v782 = vsub.f32 %v781, 1.0
    %v783 = vsel %vm779, %v777, %v782
    %v784 = vsel %vm106, %v783, 0.0
    %v785 = vrot.slane %v784, 4
    %v786 = vadd.f32 %v784, %v785
    %v787 = vrot.slane %v786, 2
    %v788 = vadd.f32 %v786, %v787
    %v789 = vrot.slane %v788, 1
    %v790 = vadd.f32 %v788, %v789
    %v791 = vmul.f32 %v790, 0.125
    %v792 = vsub.f32 %v783, %v791
    %v793 = vmul.f32 %v792, %v792
    %v794 = vsel %vm106, %v793, 0.0
    %v795 = vrot.slane %v794, 4
    %v796 = vadd.f32 %v794, %v795
    %v797 = vrot.slane %v796, 2
    %v798 = vadd.f32 %v796, %v797
    %v799 = vrot.slane %v798, 1
    %v800 = vadd.f32 %v798, %v799
    %v801 = vmul.f32 %v800, 0.125
    %v802 = vadd.f32 %v801, 1e-05
    %v803 = vrsqrt.pop %v802
    %v804 = vmul.f32 %v803, %v802
    %v805 = vmul.f32 %v804, %v803
    %v806 = vmul.f32 0.5, %v805
    %v807 = vsub.f32 1.5, %v806
    %v808 = vmul.f32 %v803, %v807
    %vm809 = vweird.f32 %v802
    %vm810 = vweird.f32 %v803
    %vm811 = vmor %vm809, %vm810
    %v812 = vsel %vm811, %v803, %v808
    %v813 = vmul.f32 %v812, %v38
    %v814 = vperm.slane %v813, 0
    %v815 = vmul.f32 %v792, %v814
    %v816 = vperm.slane %v38, 1
    %v817 = vadd.f32 %v815, %v816
    %v818 = vld [vmem:[%s2] sm:$0xff]
    %v820 = vsel %vm106, %v817, 0
    %822 = vmatpush.msra.mxu0 0.0
    %823 = vmatpush.msra.mxu0 0.0
    %824 = vmatpush.msra.mxu0 0.0
    %825 = vmatpush.msra.mxu0 0.0
    %826 = vmatpush.msra.mxu0 0.0
    %827 = vmatpush.msra.mxu0 0.0
    %828 = vmatpush.msra.mxu0 0.0
    %829 = vmatpush.msra.mxu0 0.0
    %830 = vmatpush.msra.mxu0 0.0
    %831 = vmatpush.msra.mxu0 0.0
    %832 = vmatpush.msra.mxu0 0.0
    %833 = vmatpush.msra.mxu0 0.0
    %834 = vmatpush.msra.mxu0 0.0
    %835 = vmatpush.msra.mxu0 0.0
    %836 = vmatpush.msra.mxu0 0.0
    %837 = vmatpush.msra.mxu0 %v41
    %838 = vmatmul.f32.gmra.mxu0 %v820
    %v839 = vpop.f32.mrf.mxu0
    %v840 = vadd.f32 0.0, %v839
    %841 = vdwg.mxu0
    %842 = vst.msk [vmem:[#allocation2] sm:$0xff] %vm106, %v840
    %844 = vrot.lane.b32.xlu0 %v840, 120
    %v845 = vpop.permute.xlu0 %844
    %847 = vst.msk [vmem:[#allocation2 + $0x8] sm:$0xff] %vm106, %v845
    %848 = vrot.lane.b32.xlu0 %v840, 112
    %v849 = vpop.permute.xlu0 %848
    %851 = vst.msk [vmem:[#allocation2 + $0x10] sm:$0xff] %vm106, %v849
    %852 = vrot.lane.b32.xlu0 %v840, 104
    %v853 = vpop.permute.xlu0 %852
    %855 = vst.msk [vmem:[#allocation2 + $0x18] sm:$0xff] %vm106, %v853
    %856 = vrot.lane.b32.xlu0 %v840, 96
    %v857 = vpop.permute.xlu0 %856
    %859 = vst.msk [vmem:[#allocation2 + $0x20] sm:$0xff] %vm106, %v857
    %860 = vrot.lane.b32.xlu0 %v840, 88
    %v861 = vpop.permute.xlu0 %860
    %863 = vst.msk [vmem:[#allocation2 + $0x28] sm:$0xff] %vm106, %v861
    %864 = vrot.lane.b32.xlu0 %v840, 80
    %v865 = vpop.permute.xlu0 %864
    %867 = vst.msk [vmem:[#allocation2 + $0x30] sm:$0xff] %vm106, %v865
    %868 = vrot.lane.b32.xlu0 %v840, 72
    %v869 = vpop.permute.xlu0 %868
    %871 = vst.msk [vmem:[#allocation2 + $0x38] sm:$0xff] %vm106, %v869
    %872 = vrot.lane.b32.xlu0 %v840, 64
    %v873 = vpop.permute.xlu0 %872
    %875 = vst.msk [vmem:[#allocation2 + $0x40] sm:$0xff] %vm106, %v873
    %v876 = vld [vmem:[#allocation2] sm:$0xff]
    %v877 = vld [vmem:[#allocation2 + $0x8] sm:$0xff]
    %v878 = vld [vmem:[#allocation2 + $0x10] sm:$0xff]
    %v879 = vld [vmem:[#allocation2 + $0x18] sm:$0xff]
    %v880 = vld [vmem:[#allocation2 + $0x20] sm:$0xff]
    %v881 = vld [vmem:[#allocation2 + $0x28] sm:$0xff]
    %v882 = vld [vmem:[#allocation2 + $0x30] sm:$0xff]
    %v883 = vld [vmem:[#allocation2 + $0x38] sm:$0xff]
    %v884 = vld [vmem:[#allocation2 + $0x40] sm:$0xff]
    %v885 = vperm.slane %v38, 2
    %vm886 = vcmask 588800
    %v888 = vsel %vm886, %v818, 0
    %890 = vmatpush.msra.mxu0 0.0
    %891 = vmatpush.msra.mxu0 0.0
    %892 = vmatpush.msra.mxu0 0.0
    %893 = vmatpush.msra.mxu0 0.0
    %894 = vmatpush.msra.mxu0 0.0
    %895 = vmatpush.msra.mxu0 0.0
    %896 = vmatpush.msra.mxu0 0.0
    %897 = vmatpush.msra.mxu0 %v884
    %898 = vmatpush.msra.mxu0 %v883
    %899 = vmatpush.msra.mxu0 %v882
    %900 = vmatpush.msra.mxu0 %v881
    %901 = vmatpush.msra.mxu0 %v880
    %902 = vmatpush.msra.mxu0 %v879
    %903 = vmatpush.msra.mxu0 %v878
    %904 = vmatpush.msra.mxu0 %v877
    %905 = vmatpush.msra.mxu0 %v876
    %906 = vmatmul.f32.gmra.mxu0 %v888
    %v907 = vpop.f32.mrf.mxu0
    %v908 = vadd.f32 %v885, %v907
    %909 = vdwg.mxu0
    %vm910 = vcmp.gt.f32.partialorder %v908, 0.0
    %v911 = vmul.f32 %v908, 1.442695
    %v912 = vpow.pop %v911
    %v913 = vsub.f32 %v912, 1.0
    %v914 = vsel %vm910, %v908, %v913
    %v915 = vsel %vm106, %v914, 0.0
    %v916 = vrot.slane %v915, 4
    %v917 = vadd.f32 %v915, %v916
    %v918 = vrot.slane %v917, 2
    %v919 = vadd.f32 %v917, %v918
    %v920 = vrot.slane %v919, 1
    %v921 = vadd.f32 %v919, %v920
    %v922 = vmul.f32 %v921, 0.125
    %v923 = vsub.f32 %v914, %v922
    %v924 = vmul.f32 %v923, %v923
    %v925 = vsel %vm106, %v924, 0.0
    %v926 = vrot.slane %v925, 4
    %v927 = vadd.f32 %v925, %v926
    %v928 = vrot.slane %v927, 2
    %v929 = vadd.f32 %v927, %v928
    %v930 = vrot.slane %v929, 1
    %v931 = vadd.f32 %v929, %v930
    %v932 = vmul.f32 %v931, 0.125
    %v933 = vadd.f32 %v932, 1e-05
    %v934 = vrsqrt.pop %v933
    %v935 = vmul.f32 %v934, %v933
    %v936 = vmul.f32 %v935, %v934
    %v937 = vmul.f32 0.5, %v936
    %v938 = vsub.f32 1.5, %v937
    %v939 = vmul.f32 %v934, %v938
    %vm940 = vweird.f32 %v933
    %vm941 = vweird.f32 %v934
    %vm942 = vmor %vm940, %vm941
    %v943 = vsel %vm942, %v934, %v939
    %v944 = vmul.f32 %v943, %v38
    %v945 = vperm.slane %v944, 3
    %v946 = vmul.f32 %v923, %v945
    %v947 = vperm.slane %v38, 4
    %v948 = vadd.f32 %v946, %v947
    %v949 = vld [vmem:[%s2] sm:$0xff]
    %v951 = vsel %vm106, %v948, 0
    %953 = vmatpush.msra.mxu0 0.0
    %954 = vmatpush.msra.mxu0 0.0
    %955 = vmatpush.msra.mxu0 0.0
    %956 = vmatpush.msra.mxu0 0.0
    %957 = vmatpush.msra.mxu0 0.0
    %958 = vmatpush.msra.mxu0 0.0
    %959 = vmatpush.msra.mxu0 0.0
    %960 = vmatpush.msra.mxu0 0.0
    %961 = vmatpush.msra.mxu0 0.0
    %962 = vmatpush.msra.mxu0 0.0
    %963 = vmatpush.msra.mxu0 0.0
    %964 = vmatpush.msra.mxu0 0.0
    %965 = vmatpush.msra.mxu0 0.0
    %966 = vmatpush.msra.mxu0 0.0
    %967 = vmatpush.msra.mxu0 0.0
    %968 = vmatpush.msra.mxu0 %v42
    %969 = vmatmul.f32.gmra.mxu0 %v951
    %v970 = vpop.f32.mrf.mxu0
    %v971 = vadd.f32 0.0, %v970
    %972 = vdwg.mxu0
    %973 = vst.msk [vmem:[#allocation2] sm:$0xff] %vm106, %v971
    %975 = vrot.lane.b32.xlu0 %v971, 120
    %v976 = vpop.permute.xlu0 %975
    %978 = vst.msk [vmem:[#allocation2 + $0x8] sm:$0xff] %vm106, %v976
    %979 = vrot.lane.b32.xlu0 %v971, 112
    %v980 = vpop.permute.xlu0 %979
    %982 = vst.msk [vmem:[#allocation2 + $0x10] sm:$0xff] %vm106, %v980
    %983 = vrot.lane.b32.xlu0 %v971, 104
    %v984 = vpop.permute.xlu0 %983
    %986 = vst.msk [vmem:[#allocation2 + $0x18] sm:$0xff] %vm106, %v984
    %987 = vrot.lane.b32.xlu0 %v971, 96
    %v988 = vpop.permute.xlu0 %987
    %990 = vst.msk [vmem:[#allocation2 + $0x20] sm:$0xff] %vm106, %v988
    %991 = vrot.lane.b32.xlu0 %v971, 88
    %v992 = vpop.permute.xlu0 %991
    %994 = vst.msk [vmem:[#allocation2 + $0x28] sm:$0xff] %vm106, %v992
    %995 = vrot.lane.b32.xlu0 %v971, 80
    %v996 = vpop.permute.xlu0 %995
    %998 = vst.msk [vmem:[#allocation2 + $0x30] sm:$0xff] %vm106, %v996
    %999 = vrot.lane.b32.xlu0 %v971, 72
    %v1000 = vpop.permute.xlu0 %999
    %1002 = vst.msk [vmem:[#allocation2 + $0x38] sm:$0xff] %vm106, %v1000
    %1003 = vrot.lane.b32.xlu0 %v971, 64
    %v1004 = vpop.permute.xlu0 %1003
    %1006 = vst.msk [vmem:[#allocation2 + $0x40] sm:$0xff] %vm106, %v1004
    %v1007 = vld [vmem:[#allocation2] sm:$0xff]
    %v1008 = vld [vmem:[#allocation2 + $0x8] sm:$0xff]
    %v1009 = vld [vmem:[#allocation2 + $0x10] sm:$0xff]
    %v1010 = vld [vmem:[#allocation2 + $0x18] sm:$0xff]
    %v1011 = vld [vmem:[#allocation2 + $0x20] sm:$0xff]
    %v1012 = vld [vmem:[#allocation2 + $0x28] sm:$0xff]
    %v1013 = vld [vmem:[#allocation2 + $0x30] sm:$0xff]
    %v1014 = vld [vmem:[#allocation2 + $0x38] sm:$0xff]
    %v1015 = vld [vmem:[#allocation2 + $0x40] sm:$0xff]
    %v1016 = vperm.slane %v38, 5
    %v1018 = vsel %vm886, %v949, 0
    %1020 = vmatpush.msra.mxu0 0.0
    %1021 = vmatpush.msra.mxu0 0.0
    %1022 = vmatpush.msra.mxu0 0.0
    %1023 = vmatpush.msra.mxu0 0.0
    %1024 = vmatpush.msra.mxu0 0.0
    %1025 = vmatpush.msra.mxu0 0.0
    %1026 = vmatpush.msra.mxu0 0.0
    %1027 = vmatpush.msra.mxu0 %v1015
    %1028 = vmatpush.msra.mxu0 %v1014
    %1029 = vmatpush.msra.mxu0 %v1013
    %1030 = vmatpush.msra.mxu0 %v1012
    %1031 = vmatpush.msra.mxu0 %v1011
    %1032 = vmatpush.msra.mxu0 %v1010
    %1033 = vmatpush.msra.mxu0 %v1009
    %1034 = vmatpush.msra.mxu0 %v1008
    %1035 = vmatpush.msra.mxu0 %v1007
    %1036 = vmatmul.f32.gmra.mxu0 %v1018
    %v1037 = vpop.f32.mrf.mxu0
    %v1038 = vadd.f32 %v1016, %v1037
    %1039 = vdwg.mxu0
    %vm1040 = vcmp.gt.f32.partialorder %v1038, 0.0
    %v1041 = vmul.f32 %v1038, 1.442695
    %v1042 = vpow.pop %v1041
    %v1043 = vsub.f32 %v1042, 1.0
    %v1044 = vsel %vm1040, %v1038, %v1043
    %v1045 = vsel %vm106, %v1044, 0.0
    %v1046 = vrot.slane %v1045, 4
    %v1047 = vadd.f32 %v1045, %v1046
    %v1048 = vrot.slane %v1047, 2
    %v1049 = vadd.f32 %v1047, %v1048
    %v1050 = vrot.slane %v1049, 1
    %v1051 = vadd.f32 %v1049, %v1050
    %v1052 = vmul.f32 %v1051, 0.125
    %v1053 = vsub.f32 %v1044, %v1052
    %v1054 = vmul.f32 %v1053, %v1053
    %v1055 = vsel %vm106, %v1054, 0.0
    %v1056 = vrot.slane %v1055, 4
    %v1057 = vadd.f32 %v1055, %v1056
    %v1058 = vrot.slane %v1057, 2
    %v1059 = vadd.f32 %v1057, %v1058
    %v1060 = vrot.slane %v1059, 1
    %v1061 = vadd.f32 %v1059, %v1060
    %v1062 = vmul.f32 %v1061, 0.125
    %v1063 = vadd.f32 %v1062, 1e-05
    %v1064 = vrsqrt.pop %v1063
    %v1065 = vmul.f32 %v1064, %v1063
    %v1066 = vmul.f32 %v1065, %v1064
    %v1067 = vmul.f32 0.5, %v1066
    %v1068 = vsub.f32 1.5, %v1067
    %v1069 = vmul.f32 %v1064, %v1068
    %vm1070 = vweird.f32 %v1063
    %vm1071 = vweird.f32 %v1064
    %vm1072 = vmor %vm1070, %vm1071
    %v1073 = vsel %vm1072, %v1064, %v1069
    %v1074 = vmul.f32 %v1073, %v38
    %v1075 = vperm.slane %v1074, 6
    %v1076 = vmul.f32 %v1053, %v1075
    %v1077 = vperm.slane %v38, 7
    %v1078 = vadd.f32 %v1076, %v1077
    %1079 = vst.msk [vmem:[#allocation6] sm:$0xff] %vm106, %v1078
    // Predicated region
    $region26: #{encoder_forward.1} parent=1 // pred_check
      _
    $region27: #{encoder_forward.1} parent=1 // pred_check_branch
      %1081 = sbr.rel (0) target = $region29
    $region28: #{encoder_forward.1} parent=1 // pred_region
      %1083 = vsyncadd [#allocation5], 0
      %s1085 = sshll.u32 [#allocation6], 4
      %s1086 = int_to_ptr.vmem [resolvable:$true] %s1085
      %s1087 = sshll.u32 %s5, 4
      %s1088 = int_to_ptr.hbm [resolvable:$true] %s1087
      %1090 = dma.vmem_to_hbm [thread:$0]  %s1086, 128, %s1088, [#allocation5]
    $region29: #{encoder_forward.1} parent=1 // pred_fallthru
      _
    // Predicated region
    $region30: #{encoder_forward.1} parent=1 // pred_check
      _
    $region31: #{encoder_forward.1} parent=1 // pred_check_branch
      %1092 = sbr.rel (0) target = $region33
    $region32: #{encoder_forward.1} parent=1 // pred_region
      %1094 = dma.done [#allocation5], 128
    $region33: #{encoder_forward.1} parent=1 // pred_fallthru
      _
    %1095 = vsyncpa [#allocation4], 1
    %1096 = vsyncpa [#allocation5], 1

</llo_original>
